<compile_context>
chip_gen: v6e
topology: v6e:2x2x1
jax: 0.10.0
libtpu: 0.0.40
codegen_flags: <defaults>
</compile_context>

<pallas_src>
import math

import jax
import jax.numpy as jnp
from jax import lax
from jax.experimental import pallas as pl
from jax.experimental.pallas import tpu as pltpu

# ---- model config (matches the PyTorch module globals) ----------------------
HIDDEN_DIM = 10
INPUT_SIZE = 11
N_LAYERS = 1        # single-layer LSTM (kernel implements exactly this)
SEQ_LEN = 10

H_PAD = 128         # per-gate lane padding: gate k lives in lanes [k*128, k*128+H)


def _sigmoid_tanh(v):
    # logistic(x) == 0.5 * tanh(0.5 * x) + 0.5 exactly -> single EUP push per
    # activation instead of exp + divide on the serial recurrence path.
    return 0.5 * jnp.tanh(0.5 * v) + 0.5


# ---- Pallas kernel -----------------------------------------------------------
def lstm_fc_kernel(x_ref,      # (T*B_pad, I_pad)    f32  time-major inputs, zero-padded
                   wih_ref,    # (I_pad, 4*H_PAD)    f32  input weights, gate-padded
                   bias_ref,   # (1, 4*H_PAD)        f32  b_ih + b_hh, gate-padded
                   whh_ref,    # (K_pad, 4*H_PAD)    f32  recurrent weights, compact K=16
                   fcw_ref,    # (1, H_PAD)          f32  fc weight row, zero-padded
                   fcb_ref,    # (1,)                f32  fc bias (SMEM scalar)
                   out_ref,    # (B_pad, H_PAD)      f32  lane-dense output (value replicated)
                   xg_ref):    # (T*B_pad, 4*H_PAD)  f32  VMEM scratch: x @ W_ih + b
    BP = out_ref.shape[0]              # padded batch (8 sublanes)
    T = x_ref.shape[0] // BP           # timesteps
    G = xg_ref.shape[1]                # 4 * H_PAD
    HP = G // 4                        # per-gate lane block (128)
    KC = whh_ref.shape[0]              # compact contraction dim (16)

    # Input projection for every timestep in one MXU pass, bias folded in.
    # Off the serial recurrence path; lands in VMEM scratch, never in HBM.
    xg_ref[...] = jnp.dot(x_ref[...], wih_ref[...],
                          preferred_element_type=jnp.float32) + bias_ref[...]

    def step(t, carry):
        h, c = carry
        row = pl.multiple_of(t * BP, BP)            # sublane-tile aligned slice
        # Only the recurrent matmul sits on the serial path.  K compacted to
        # 16: h lanes >= H are exactly zero and whh rows >= H are zero, so the
        # result is bit-identical to the full-width contraction.
        gates = xg_ref[pl.ds(row, BP), :] + jnp.dot(
            h[:, :KC], whh_ref[...], preferred_element_type=jnp.float32)
        # Gate slices are vreg-aligned (multiples of 128 lanes): free picks.
        i_g = _sigmoid_tanh(gates[:, 0 * HP:1 * HP])
        f_g = _sigmoid_tanh(gates[:, 1 * HP:2 * HP])
        g_g = jnp.tanh(gates[:, 2 * HP:3 * HP])
        o_g = _sigmoid_tanh(gates[:, 3 * HP:4 * HP])
        # Padded lanes: gates == 0 -> i=f=o=0.5, g=0 -> c and h stay exactly 0,
        # so padded lanes never leak into real lanes.
        c_new = f_g * c + i_g * g_g
        h_new = o_g * jnp.tanh(c_new)
        return (h_new, c_new)

    h0 = jnp.zeros((BP, HP), jnp.float32)
    c0 = jnp.zeros((BP, HP), jnp.float32)
    h, _ = lax.fori_loop(0, T, step, (h0, c0), unroll=True)

    # fc(out[:, -1, :]) as VPU multiply + XLU lane reduction (no N=1 MXU matmul).
    # fcw padded lanes are zero, so the full 128-lane sum equals the true H-dot.
    out_val = jnp.sum(h * fcw_ref[...], axis=-1, keepdims=True) + fcb_ref[0]
    out_ref[...] = jnp.broadcast_to(out_val, out_ref.shape)   # lane-dense unmasked store


# ---- one-time parameter preparation (keep OFF the per-call path) -------------
def prepare_params(params):
    f32 = jnp.float32
    H = params["w_hh"].shape[1]
    I = params["w_ih"].shape[1]
    I_pad = ((I + 7) // 8) * 8          # 16: contraction dim of the input matmul
    K_pad = ((H + 7) // 8) * 8          # 16: compact contraction dim of the recurrence

    wih_t = params["w_ih"].astype(f32).T                   # (I, 4H), gate order [i,f,g,o]
    whh_t = params["w_hh"].astype(f32).T                   # (H, 4H)
    bias = (params["b_ih"] + params["b_hh"]).astype(f32)   # (4H,)

    # Gate-padded layout via single reshape -> pad -> reshape per tensor.
    wih_p = jnp.pad(wih_t.reshape(I, 4, H),
                    ((0, I_pad - I), (0, 0), (0, H_PAD - H))).reshape(I_pad, 4 * H_PAD)
    whh_p = jnp.pad(whh_t.reshape(H, 4, H),
                    ((0, K_pad - H), (0, 0), (0, H_PAD - H))).reshape(K_pad, 4 * H_PAD)
    bias_p = jnp.pad(bias.reshape(4, H),
                     ((0, 0), (0, H_PAD - H))).reshape(1, 4 * H_PAD)

    fcw_p = jnp.pad(params["fc_w"].astype(f32), ((0, 0), (0, H_PAD - H)))   # (1, H_PAD)
    fcb = params["fc_b"].astype(f32).reshape(1)                             # (1,)

    return {"wih_p": wih_p, "whh_p": whh_p, "bias_p": bias_p,
            "fcw_p": fcw_p, "fcb": fcb}


# ---- wrapper -----------------------------------------------------------------
@jax.jit
def lstm_model_forward(x, prep):
    """x: (B, T, I) float32 (batch_first, like the PyTorch module). Returns (B, 1)."""
    B, T, I = x.shape
    f32 = jnp.float32
    B_pad = max(8, ((B + 7) // 8) * 8)
    I_pad = prep["wih_p"].shape[0]

    # Time-major, pad batch to 8 sublanes and features to I_pad lanes (tiny HLOs).
    xt = jnp.transpose(x.astype(f32), (1, 0, 2))                   # (T, B, I)
    xt = jnp.pad(xt, ((0, 0), (0, B_pad - B), (0, I_pad - I)))     # (T, B_pad, I_pad)
    x_flat = xt.reshape(T * B_pad, I_pad)

    vmem = pl.BlockSpec(memory_space=pltpu.MemorySpace.VMEM)
    smem = pl.BlockSpec(memory_space=pltpu.MemorySpace.SMEM)

    out_padded = pl.pallas_call(
        lstm_fc_kernel,
        out_shape=jax.ShapeDtypeStruct((B_pad, H_PAD), f32),
        in_specs=[vmem, vmem, vmem, vmem, vmem, smem],
        out_specs=vmem,
        scratch_shapes=[pltpu.VMEM((T * B_pad, 4 * H_PAD), f32)],
    )(x_flat, prep["wih_p"], prep["bias_p"], prep["whh_p"], prep["fcw_p"], prep["fcb"])

    return out_padded[:B, :1]


# ---- deterministic parameter init (PyTorch-style uniform(-1/sqrt(H), 1/sqrt(H)))
def init_params(key, input_size, hidden_dim):
    k = 1.0 / math.sqrt(hidden_dim)
    keys = jax.random.split(key, 6)
    u = lambda kk, shape: jax.random.uniform(kk, shape, jnp.float32, -k, k)
    return {
        "w_ih": u(keys[0], (4 * hidden_dim, input_size)),
        "w_hh": u(keys[1], (4 * hidden_dim, hidden_dim)),
        "b_ih": u(keys[2], (4 * hidden_dim,)),
        "b_hh": u(keys[3], (4 * hidden_dim,)),
        "fc_w": u(keys[4], (1, hidden_dim)),
        "fc_b": u(keys[5], (1,)),
    }


# ---- pure-JAX reference (for correctness check) -------------------------------
def reference_forward(x, params):
    B, T, I = x.shape
    H = params["w_hh"].shape[1]
    h = jnp.zeros((B, H), jnp.float32)
    c = jnp.zeros((B, H), jnp.float32)
    wih_t = params["w_ih"].T
    whh_t = params["w_hh"].T
    bias = params["b_ih"] + params["b_hh"]

    def step(carry, xt):
        h, c = carry
        gates = (jnp.dot(xt, wih_t, precision=lax.Precision.HIGHEST)
                 + jnp.dot(h, whh_t, precision=lax.Precision.HIGHEST) + bias)
        i_g = jax.nn.sigmoid(gates[:, 0 * H:1 * H])
        f_g = jax.nn.sigmoid(gates[:, 1 * H:2 * H])
        g_g = jnp.tanh(gates[:, 2 * H:3 * H])
        o_g = jax.nn.sigmoid(gates[:, 3 * H:4 * H])
        c = f_g * c + i_g * g_g
        h = o_g * jnp.tanh(c)
        return (h, c), None

    (h, c), _ = lax.scan(step, (h, c), jnp.transpose(x, (1, 0, 2)))
    return jnp.dot(h, params["fc_w"].T, precision=lax.Precision.HIGHEST) + params["fc_b"]


if __name__ == "__main__":
    key = jax.random.PRNGKey(0)
    pkey, xkey = jax.random.split(key)

    params = init_params(pkey, INPUT_SIZE, HIDDEN_DIM)
    prep = prepare_params(params)          # one-time layout work, off the call path

    batch_size = 4
    x = jax.random.normal(xkey, (batch_size, SEQ_LEN, INPUT_SIZE), jnp.float32)

    out = jax.block_until_ready(lstm_model_forward(x, prep))

    ref = reference_forward(x, params)
    assert out.shape == (batch_size, 1)
    assert jnp.allclose(out, ref, atol=2e-4, rtol=2e-4), (out, ref)

    print("KERNEL_OK")
</pallas_src>

<mosaic_0001>
module attributes {stable_mosaic.version = 11 : i64} {
  func.func @lstm_fc_kernel(%arg0: memref<80x16xf32, #tpu.memory_space<vmem>>, %arg1: memref<16x512xf32, #tpu.memory_space<vmem>>, %arg2: memref<1x512xf32, #tpu.memory_space<vmem>>, %arg3: memref<16x512xf32, #tpu.memory_space<vmem>>, %arg4: memref<1x128xf32, #tpu.memory_space<vmem>>, %arg5: memref<1xf32, #tpu.memory_space<smem>>, %arg6: memref<8x128xf32, #tpu.memory_space<vmem>>, %arg7: memref<80x512xf32, #tpu.memory_space<vmem>>) attributes {dimension_semantics = [], scalar_prefetch = 0 : i64, scratch_operands = 1 : i64, tpu.core_type = #tpu.core_type<tc>} {
    %c0 = arith.constant 0 : index
    %c0_0 = arith.constant 0 : index
    %0 = vector.load %arg0[%c0, %c0_0] : memref<80x16xf32, #tpu.memory_space<vmem>>, vector<80x16xf32>
    %c0_1 = arith.constant 0 : index
    %c0_2 = arith.constant 0 : index
    %1 = vector.load %arg1[%c0_1, %c0_2] : memref<16x512xf32, #tpu.memory_space<vmem>>, vector<16x512xf32>
    %cst = arith.constant dense<0.000000e+00> : vector<80x512xf32>
    %2 = tpu.matmul %0, %1, %cst {dimension_numbers = #tpu.dot_dimension_numbers<[1], [0], [0], [1], [0, 0, 1, 1], [], []>} : vector<80x16xf32>, vector<16x512xf32>, vector<80x512xf32> -> vector<80x512xf32>
    %c0_3 = arith.constant 0 : index
    %c0_4 = arith.constant 0 : index
    %3 = vector.load %arg2[%c0_3, %c0_4] : memref<1x512xf32, #tpu.memory_space<vmem>>, vector<1x512xf32>
    %4 = vector.broadcast %3 : vector<1x512xf32> to vector<80x512xf32>
    %5 = arith.addf %2, %4 : vector<80x512xf32>
    %c0_5 = arith.constant 0 : index
    %c0_6 = arith.constant 0 : index
    %6 = vector.load %arg7[%c0_5, %c0_6] : memref<80x512xf32, #tpu.memory_space<vmem>>, vector<80x512xf32>
    tpu.vector_store %arg7[%c0_5, %c0_6], %5 {strides = array<i32>} : memref<80x512xf32, #tpu.memory_space<vmem>>, vector<80x512xf32>,
    %cst_7 = arith.constant 0.000000e+00 : f32
    %7 = vector.broadcast %cst_7 : f32 to vector<8x128xf32>
    %cst_8 = arith.constant 0.000000e+00 : f32
    %8 = vector.broadcast %cst_8 : f32 to vector<8x128xf32>
    %c0_i32 = arith.constant 0 : i32
    %c8_i32 = arith.constant 8 : i32
    %9 = arith.muli %c0_i32, %c8_i32 : i32
    %10 = tpu.assume_multiple %9, 8 : i32
    %11 = arith.index_cast %10 : i32 to index
    %c0_9 = arith.constant 0 : index
    %12 = vector.load %arg7[%11, %c0_9] : memref<80x512xf32, #tpu.memory_space<vmem>>, vector<8x512xf32>
    %13 = vector.extract_strided_slice %7 {offsets = [0, 0], sizes = [8, 16], strides = [1, 1]} : vector<8x128xf32> to vector<8x16xf32>
    %c0_10 = arith.constant 0 : index
    %c0_11 = arith.constant 0 : index
    %14 = vector.load %arg3[%c0_10, %c0_11] : memref<16x512xf32, #tpu.memory_space<vmem>>, vector<16x512xf32>
    %cst_12 = arith.constant dense<0.000000e+00> : vector<8x512xf32>
    %15 = tpu.matmul %13, %14, %cst_12 {dimension_numbers = #tpu.dot_dimension_numbers<[1], [0], [0], [1], [0, 0, 1, 1], [], []>} : vector<8x16xf32>, vector<16x512xf32>, vector<8x512xf32> -> vector<8x512xf32>
    %16 = arith.addf %12, %15 : vector<8x512xf32>
    %17 = vector.extract_strided_slice %16 {offsets = [0, 0], sizes = [8, 128], strides = [1, 1]} : vector<8x512xf32> to vector<8x128xf32>
    %cst_13 = arith.constant 5.000000e-01 : f32
    %18 = vector.broadcast %cst_13 : f32 to vector<8x128xf32>
    %19 = arith.mulf %18, %17 : vector<8x128xf32>
    %20 = math.tanh %19 : vector<8x128xf32>
    %cst_14 = arith.constant 5.000000e-01 : f32
    %21 = vector.broadcast %cst_14 : f32 to vector<8x128xf32>
    %22 = arith.mulf %21, %20 : vector<8x128xf32>
    %cst_15 = arith.constant 5.000000e-01 : f32
    %23 = vector.broadcast %cst_15 : f32 to vector<8x128xf32>
    %24 = arith.addf %22, %23 : vector<8x128xf32>
    %25 = vector.extract_strided_slice %16 {offsets = [0, 128], sizes = [8, 128], strides = [1, 1]} : vector<8x512xf32> to vector<8x128xf32>
    %cst_16 = arith.constant 5.000000e-01 : f32
    %26 = vector.broadcast %cst_16 : f32 to vector<8x128xf32>
    %27 = arith.mulf %26, %25 : vector<8x128xf32>
    %28 = math.tanh %27 : vector<8x128xf32>
    %cst_17 = arith.constant 5.000000e-01 : f32
    %29 = vector.broadcast %cst_17 : f32 to vector<8x128xf32>
    %30 = arith.mulf %29, %28 : vector<8x128xf32>
    %cst_18 = arith.constant 5.000000e-01 : f32
    %31 = vector.broadcast %cst_18 : f32 to vector<8x128xf32>
    %32 = arith.addf %30, %31 : vector<8x128xf32>
    %33 = vector.extract_strided_slice %16 {offsets = [0, 256], sizes = [8, 128], strides = [1, 1]} : vector<8x512xf32> to vector<8x128xf32>
    %34 = math.tanh %33 : vector<8x128xf32>
    %35 = vector.extract_strided_slice %16 {offsets = [0, 384], sizes = [8, 128], strides = [1, 1]} : vector<8x512xf32> to vector<8x128xf32>
    %cst_19 = arith.constant 5.000000e-01 : f32
    %36 = vector.broadcast %cst_19 : f32 to vector<8x128xf32>
    %37 = arith.mulf %36, %35 : vector<8x128xf32>
    %38 = math.tanh %37 : vector<8x128xf32>
    %cst_20 = arith.constant 5.000000e-01 : f32
    %39 = vector.broadcast %cst_20 : f32 to vector<8x128xf32>
    %40 = arith.mulf %39, %38 : vector<8x128xf32>
    %cst_21 = arith.constant 5.000000e-01 : f32
    %41 = vector.broadcast %cst_21 : f32 to vector<8x128xf32>
    %42 = arith.addf %40, %41 : vector<8x128xf32>
    %43 = arith.mulf %32, %8 : vector<8x128xf32>
    %44 = arith.mulf %24, %34 : vector<8x128xf32>
    %45 = arith.addf %43, %44 : vector<8x128xf32>
    %46 = math.tanh %45 : vector<8x128xf32>
    %47 = arith.mulf %42, %46 : vector<8x128xf32>
    %c1_i32 = arith.constant 1 : i32
    %c8_i32_22 = arith.constant 8 : i32
    %48 = arith.muli %c1_i32, %c8_i32_22 : i32
    %49 = tpu.assume_multiple %48, 8 : i32
    %50 = arith.index_cast %49 : i32 to index
    %c0_23 = arith.constant 0 : index
    %51 = vector.load %arg7[%50, %c0_23] : memref<80x512xf32, #tpu.memory_space<vmem>>, vector<8x512xf32>
    %52 = vector.extract_strided_slice %47 {offsets = [0, 0], sizes = [8, 16], strides = [1, 1]} : vector<8x128xf32> to vector<8x16xf32>
    %c0_24 = arith.constant 0 : index
    %c0_25 = arith.constant 0 : index
    %53 = vector.load %arg3[%c0_24, %c0_25] : memref<16x512xf32, #tpu.memory_space<vmem>>, vector<16x512xf32>
    %cst_26 = arith.constant dense<0.000000e+00> : vector<8x512xf32>
    %54 = tpu.matmul %52, %53, %cst_26 {dimension_numbers = #tpu.dot_dimension_numbers<[1], [0], [0], [1], [0, 0, 1, 1], [], []>} : vector<8x16xf32>, vector<16x512xf32>, vector<8x512xf32> -> vector<8x512xf32>
    %55 = arith.addf %51, %54 : vector<8x512xf32>
    %56 = vector.extract_strided_slice %55 {offsets = [0, 0], sizes = [8, 128], strides = [1, 1]} : vector<8x512xf32> to vector<8x128xf32>
    %cst_27 = arith.constant 5.000000e-01 : f32
    %57 = vector.broadcast %cst_27 : f32 to vector<8x128xf32>
    %58 = arith.mulf %57, %56 : vector<8x128xf32>
    %59 = math.tanh %58 : vector<8x128xf32>
    %cst_28 = arith.constant 5.000000e-01 : f32
    %60 = vector.broadcast %cst_28 : f32 to vector<8x128xf32>
    %61 = arith.mulf %60, %59 : vector<8x128xf32>
    %cst_29 = arith.constant 5.000000e-01 : f32
    %62 = vector.broadcast %cst_29 : f32 to vector<8x128xf32>
    %63 = arith.addf %61, %62 : vector<8x128xf32>
    %64 = vector.extract_strided_slice %55 {offsets = [0, 128], sizes = [8, 128], strides = [1, 1]} : vector<8x512xf32> to vector<8x128xf32>
    %cst_30 = arith.constant 5.000000e-01 : f32
    %65 = vector.broadcast %cst_30 : f32 to vector<8x128xf32>
    %66 = arith.mulf %65, %64 : vector<8x128xf32>
    %67 = math.tanh %66 : vector<8x128xf32>
    %cst_31 = arith.constant 5.000000e-01 : f32
    %68 = vector.broadcast %cst_31 : f32 to vector<8x128xf32>
    %69 = arith.mulf %68, %67 : vector<8x128xf32>
    %cst_32 = arith.constant 5.000000e-01 : f32
    %70 = vector.broadcast %cst_32 : f32 to vector<8x128xf32>
    %71 = arith.addf %69, %70 : vector<8x128xf32>
    %72 = vector.extract_strided_slice %55 {offsets = [0, 256], sizes = [8, 128], strides = [1, 1]} : vector<8x512xf32> to vector<8x128xf32>
    %73 = math.tanh %72 : vector<8x128xf32>
    %74 = vector.extract_strided_slice %55 {offsets = [0, 384], sizes = [8, 128], strides = [1, 1]} : vector<8x512xf32> to vector<8x128xf32>
    %cst_33 = arith.constant 5.000000e-01 : f32
    %75 = vector.broadcast %cst_33 : f32 to vector<8x128xf32>
    %76 = arith.mulf %75, %74 : vector<8x128xf32>
    %77 = math.tanh %76 : vector<8x128xf32>
    %cst_34 = arith.constant 5.000000e-01 : f32
    %78 = vector.broadcast %cst_34 : f32 to vector<8x128xf32>
    %79 = arith.mulf %78, %77 : vector<8x128xf32>
    %cst_35 = arith.constant 5.000000e-01 : f32
    %80 = vector.broadcast %cst_35 : f32 to vector<8x128xf32>
    %81 = arith.addf %79, %80 : vector<8x128xf32>
    %82 = arith.mulf %71, %45 : vector<8x128xf32>
    %83 = arith.mulf %63, %73 : vector<8x128xf32>
    %84 = arith.addf %82, %83 : vector<8x128xf32>
    %85 = math.tanh %84 : vector<8x128xf32>
    %86 = arith.mulf %81, %85 : vector<8x128xf32>
    %c2_i32 = arith.constant 2 : i32
    %c8_i32_36 = arith.constant 8 : i32
    %87 = arith.muli %c2_i32, %c8_i32_36 : i32
    %88 = tpu.assume_multiple %87, 8 : i32
    %89 = arith.index_cast %88 : i32 to index
    %c0_37 = arith.constant 0 : index
    %90 = vector.load %arg7[%89, %c0_37] : memref<80x512xf32, #tpu.memory_space<vmem>>, vector<8x512xf32>
    %91 = vector.extract_strided_slice %86 {offsets = [0, 0], sizes = [8, 16], strides = [1, 1]} : vector<8x128xf32> to vector<8x16xf32>
    %c0_38 = arith.constant 0 : index
    %c0_39 = arith.constant 0 : index
    %92 = vector.load %arg3[%c0_38, %c0_39] : memref<16x512xf32, #tpu.memory_space<vmem>>, vector<16x512xf32>
    %cst_40 = arith.constant dense<0.000000e+00> : vector<8x512xf32>
    %93 = tpu.matmul %91, %92, %cst_40 {dimension_numbers = #tpu.dot_dimension_numbers<[1], [0], [0], [1], [0, 0, 1, 1], [], []>} : vector<8x16xf32>, vector<16x512xf32>, vector<8x512xf32> -> vector<8x512xf32>
    %94 = arith.addf %90, %93 : vector<8x512xf32>
    %95 = vector.extract_strided_slice %94 {offsets = [0, 0], sizes = [8, 128], strides = [1, 1]} : vector<8x512xf32> to vector<8x128xf32>
    %cst_41 = arith.constant 5.000000e-01 : f32
    %96 = vector.broadcast %cst_41 : f32 to vector<8x128xf32>
    %97 = arith.mulf %96, %95 : vector<8x128xf32>
    %98 = math.tanh %97 : vector<8x128xf32>
    %cst_42 = arith.constant 5.000000e-01 : f32
    %99 = vector.broadcast %cst_42 : f32 to vector<8x128xf32>
    %100 = arith.mulf %99, %98 : vector<8x128xf32>
    %cst_43 = arith.constant 5.000000e-01 : f32
    %101 = vector.broadcast %cst_43 : f32 to vector<8x128xf32>
    %102 = arith.addf %100, %101 : vector<8x128xf32>
    %103 = vector.extract_strided_slice %94 {offsets = [0, 128], sizes = [8, 128], strides = [1, 1]} : vector<8x512xf32> to vector<8x128xf32>
    %cst_44 = arith.constant 5.000000e-01 : f32
    %104 = vector.broadcast %cst_44 : f32 to vector<8x128xf32>
    %105 = arith.mulf %104, %103 : vector<8x128xf32>
    %106 = math.tanh %105 : vector<8x128xf32>
    %cst_45 = arith.constant 5.000000e-01 : f32
    %107 = vector.broadcast %cst_45 : f32 to vector<8x128xf32>
    %108 = arith.mulf %107, %106 : vector<8x128xf32>
    %cst_46 = arith.constant 5.000000e-01 : f32
    %109 = vector.broadcast %cst_46 : f32 to vector<8x128xf32>
    %110 = arith.addf %108, %109 : vector<8x128xf32>
    %111 = vector.extract_strided_slice %94 {offsets = [0, 256], sizes = [8, 128], strides = [1, 1]} : vector<8x512xf32> to vector<8x128xf32>
    %112 = math.tanh %111 : vector<8x128xf32>
    %113 = vector.extract_strided_slice %94 {offsets = [0, 384], sizes = [8, 128], strides = [1, 1]} : vector<8x512xf32> to vector<8x128xf32>
    %cst_47 = arith.constant 5.000000e-01 : f32
    %114 = vector.broadcast %cst_47 : f32 to vector<8x128xf32>
    %115 = arith.mulf %114, %113 : vector<8x128xf32>
    %116 = math.tanh %115 : vector<8x128xf32>
    %cst_48 = arith.constant 5.000000e-01 : f32
    %117 = vector.broadcast %cst_48 : f32 to vector<8x128xf32>
    %118 = arith.mulf %117, %116 : vector<8x128xf32>
    %cst_49 = arith.constant 5.000000e-01 : f32
    %119 = vector.broadcast %cst_49 : f32 to vector<8x128xf32>
    %120 = arith.addf %118, %119 : vector<8x128xf32>
    %121 = arith.mulf %110, %84 : vector<8x128xf32>
    %122 = arith.mulf %102, %112 : vector<8x128xf32>
    %123 = arith.addf %121, %122 : vector<8x128xf32>
    %124 = math.tanh %123 : vector<8x128xf32>
    %125 = arith.mulf %120, %124 : vector<8x128xf32>
    %c3_i32 = arith.constant 3 : i32
    %c8_i32_50 = arith.constant 8 : i32
    %126 = arith.muli %c3_i32, %c8_i32_50 : i32
    %127 = tpu.assume_multiple %126, 8 : i32
    %128 = arith.index_cast %127 : i32 to index
    %c0_51 = arith.constant 0 : index
    %129 = vector.load %arg7[%128, %c0_51] : memref<80x512xf32, #tpu.memory_space<vmem>>, vector<8x512xf32>
    %130 = vector.extract_strided_slice %125 {offsets = [0, 0], sizes = [8, 16], strides = [1, 1]} : vector<8x128xf32> to vector<8x16xf32>
    %c0_52 = arith.constant 0 : index
    %c0_53 = arith.constant 0 : index
    %131 = vector.load %arg3[%c0_52, %c0_53] : memref<16x512xf32, #tpu.memory_space<vmem>>, vector<16x512xf32>
    %cst_54 = arith.constant dense<0.000000e+00> : vector<8x512xf32>
    %132 = tpu.matmul %130, %131, %cst_54 {dimension_numbers = #tpu.dot_dimension_numbers<[1], [0], [0], [1], [0, 0, 1, 1], [], []>} : vector<8x16xf32>, vector<16x512xf32>, vector<8x512xf32> -> vector<8x512xf32>
    %133 = arith.addf %129, %132 : vector<8x512xf32>
    %134 = vector.extract_strided_slice %133 {offsets = [0, 0], sizes = [8, 128], strides = [1, 1]} : vector<8x512xf32> to vector<8x128xf32>
    %cst_55 = arith.constant 5.000000e-01 : f32
    %135 = vector.broadcast %cst_55 : f32 to vector<8x128xf32>
    %136 = arith.mulf %135, %134 : vector<8x128xf32>
    %137 = math.tanh %136 : vector<8x128xf32>
    %cst_56 = arith.constant 5.000000e-01 : f32
    %138 = vector.broadcast %cst_56 : f32 to vector<8x128xf32>
    %139 = arith.mulf %138, %137 : vector<8x128xf32>
    %cst_57 = arith.constant 5.000000e-01 : f32
    %140 = vector.broadcast %cst_57 : f32 to vector<8x128xf32>
    %141 = arith.addf %139, %140 : vector<8x128xf32>
    %142 = vector.extract_strided_slice %133 {offsets = [0, 128], sizes = [8, 128], strides = [1, 1]} : vector<8x512xf32> to vector<8x128xf32>
    %cst_58 = arith.constant 5.000000e-01 : f32
    %143 = vector.broadcast %cst_58 : f32 to vector<8x128xf32>
    %144 = arith.mulf %143, %142 : vector<8x128xf32>
    %145 = math.tanh %144 : vector<8x128xf32>
    %cst_59 = arith.constant 5.000000e-01 : f32
    %146 = vector.broadcast %cst_59 : f32 to vector<8x128xf32>
    %147 = arith.mulf %146, %145 : vector<8x128xf32>
    %cst_60 = arith.constant 5.000000e-01 : f32
    %148 = vector.broadcast %cst_60 : f32 to vector<8x128xf32>
    %149 = arith.addf %147, %148 : vector<8x128xf32>
    %150 = vector.extract_strided_slice %133 {offsets = [0, 256], sizes = [8, 128], strides = [1, 1]} : vector<8x512xf32> to vector<8x128xf32>
    %151 = math.tanh %150 : vector<8x128xf32>
    %152 = vector.extract_strided_slice %133 {offsets = [0, 384], sizes = [8, 128], strides = [1, 1]} : vector<8x512xf32> to vector<8x128xf32>
    %cst_61 = arith.constant 5.000000e-01 : f32
    %153 = vector.broadcast %cst_61 : f32 to vector<8x128xf32>
    %154 = arith.mulf %153, %152 : vector<8x128xf32>
    %155 = math.tanh %154 : vector<8x128xf32>
    %cst_62 = arith.constant 5.000000e-01 : f32
    %156 = vector.broadcast %cst_62 : f32 to vector<8x128xf32>
    %157 = arith.mulf %156, %155 : vector<8x128xf32>
    %cst_63 = arith.constant 5.000000e-01 : f32
    %158 = vector.broadcast %cst_63 : f32 to vector<8x128xf32>
    %159 = arith.addf %157, %158 : vector<8x128xf32>
    %160 = arith.mulf %149, %123 : vector<8x128xf32>
    %161 = arith.mulf %141, %151 : vector<8x128xf32>
    %162 = arith.addf %160, %161 : vector<8x128xf32>
    %163 = math.tanh %162 : vector<8x128xf32>
    %164 = arith.mulf %159, %163 : vector<8x128xf32>
    %c4_i32 = arith.constant 4 : i32
    %c8_i32_64 = arith.constant 8 : i32
    %165 = arith.muli %c4_i32, %c8_i32_64 : i32
    %166 = tpu.assume_multiple %165, 8 : i32
    %167 = arith.index_cast %166 : i32 to index
    %c0_65 = arith.constant 0 : index
    %168 = vector.load %arg7[%167, %c0_65] : memref<80x512xf32, #tpu.memory_space<vmem>>, vector<8x512xf32>
    %169 = vector.extract_strided_slice %164 {offsets = [0, 0], sizes = [8, 16], strides = [1, 1]} : vector<8x128xf32> to vector<8x16xf32>
    %c0_66 = arith.constant 0 : index
    %c0_67 = arith.constant 0 : index
    %170 = vector.load %arg3[%c0_66, %c0_67] : memref<16x512xf32, #tpu.memory_space<vmem>>, vector<16x512xf32>
    %cst_68 = arith.constant dense<0.000000e+00> : vector<8x512xf32>
    %171 = tpu.matmul %169, %170, %cst_68 {dimension_numbers = #tpu.dot_dimension_numbers<[1], [0], [0], [1], [0, 0, 1, 1], [], []>} : vector<8x16xf32>, vector<16x512xf32>, vector<8x512xf32> -> vector<8x512xf32>
    %172 = arith.addf %168, %171 : vector<8x512xf32>
    %173 = vector.extract_strided_slice %172 {offsets = [0, 0], sizes = [8, 128], strides = [1, 1]} : vector<8x512xf32> to vector<8x128xf32>
    %cst_69 = arith.constant 5.000000e-01 : f32
    %174 = vector.broadcast %cst_69 : f32 to vector<8x128xf32>
    %175 = arith.mulf %174, %173 : vector<8x128xf32>
    %176 = math.tanh %175 : vector<8x128xf32>
    %cst_70 = arith.constant 5.000000e-01 : f32
    %177 = vector.broadcast %cst_70 : f32 to vector<8x128xf32>
    %178 = arith.mulf %177, %176 : vector<8x128xf32>
    %cst_71 = arith.constant 5.000000e-01 : f32
    %179 = vector.broadcast %cst_71 : f32 to vector<8x128xf32>
    %180 = arith.addf %178, %179 : vector<8x128xf32>
    %181 = vector.extract_strided_slice %172 {offsets = [0, 128], sizes = [8, 128], strides = [1, 1]} : vector<8x512xf32> to vector<8x128xf32>
    %cst_72 = arith.constant 5.000000e-01 : f32
    %182 = vector.broadcast %cst_72 : f32 to vector<8x128xf32>
    %183 = arith.mulf %182, %181 : vector<8x128xf32>
    %184 = math.tanh %183 : vector<8x128xf32>
    %cst_73 = arith.constant 5.000000e-01 : f32
    %185 = vector.broadcast %cst_73 : f32 to vector<8x128xf32>
    %186 = arith.mulf %185, %184 : vector<8x128xf32>
    %cst_74 = arith.constant 5.000000e-01 : f32
    %187 = vector.broadcast %cst_74 : f32 to vector<8x128xf32>
    %188 = arith.addf %186, %187 : vector<8x128xf32>
    %189 = vector.extract_strided_slice %172 {offsets = [0, 256], sizes = [8, 128], strides = [1, 1]} : vector<8x512xf32> to vector<8x128xf32>
    %190 = math.tanh %189 : vector<8x128xf32>
    %191 = vector.extract_strided_slice %172 {offsets = [0, 384], sizes = [8, 128], strides = [1, 1]} : vector<8x512xf32> to vector<8x128xf32>
    %cst_75 = arith.constant 5.000000e-01 : f32
    %192 = vector.broadcast %cst_75 : f32 to vector<8x128xf32>
    %193 = arith.mulf %192, %191 : vector<8x128xf32>
    %194 = math.tanh %193 : vector<8x128xf32>
    %cst_76 = arith.constant 5.000000e-01 : f32
    %195 = vector.broadcast %cst_76 : f32 to vector<8x128xf32>
    %196 = arith.mulf %195, %194 : vector<8x128xf32>
    %cst_77 = arith.constant 5.000000e-01 : f32
    %197 = vector.broadcast %cst_77 : f32 to vector<8x128xf32>
    %198 = arith.addf %196, %197 : vector<8x128xf32>
    %199 = arith.mulf %188, %162 : vector<8x128xf32>
    %200 = arith.mulf %180, %190 : vector<8x128xf32>
    %201 = arith.addf %199, %200 : vector<8x128xf32>
    %202 = math.tanh %201 : vector<8x128xf32>
    %203 = arith.mulf %198, %202 : vector<8x128xf32>
    %c5_i32 = arith.constant 5 : i32
    %c8_i32_78 = arith.constant 8 : i32
    %204 = arith.muli %c5_i32, %c8_i32_78 : i32
    %205 = tpu.assume_multiple %204, 8 : i32
    %206 = arith.index_cast %205 : i32 to index
    %c0_79 = arith.constant 0 : index
    %207 = vector.load %arg7[%206, %c0_79] : memref<80x512xf32, #tpu.memory_space<vmem>>, vector<8x512xf32>
    %208 = vector.extract_strided_slice %203 {offsets = [0, 0], sizes = [8, 16], strides = [1, 1]} : vector<8x128xf32> to vector<8x16xf32>
    %c0_80 = arith.constant 0 : index
    %c0_81 = arith.constant 0 : index
    %209 = vector.load %arg3[%c0_80, %c0_81] : memref<16x512xf32, #tpu.memory_space<vmem>>, vector<16x512xf32>
    %cst_82 = arith.constant dense<0.000000e+00> : vector<8x512xf32>
    %210 = tpu.matmul %208, %209, %cst_82 {dimension_numbers = #tpu.dot_dimension_numbers<[1], [0], [0], [1], [0, 0, 1, 1], [], []>} : vector<8x16xf32>, vector<16x512xf32>, vector<8x512xf32> -> vector<8x512xf32>
    %211 = arith.addf %207, %210 : vector<8x512xf32>
    %212 = vector.extract_strided_slice %211 {offsets = [0, 0], sizes = [8, 128], strides = [1, 1]} : vector<8x512xf32> to vector<8x128xf32>
    %cst_83 = arith.constant 5.000000e-01 : f32
    %213 = vector.broadcast %cst_83 : f32 to vector<8x128xf32>
    %214 = arith.mulf %213, %212 : vector<8x128xf32>
    %215 = math.tanh %214 : vector<8x128xf32>
    %cst_84 = arith.constant 5.000000e-01 : f32
    %216 = vector.broadcast %cst_84 : f32 to vector<8x128xf32>
    %217 = arith.mulf %216, %215 : vector<8x128xf32>
    %cst_85 = arith.constant 5.000000e-01 : f32
    %218 = vector.broadcast %cst_85 : f32 to vector<8x128xf32>
    %219 = arith.addf %217, %218 : vector<8x128xf32>
    %220 = vector.extract_strided_slice %211 {offsets = [0, 128], sizes = [8, 128], strides = [1, 1]} : vector<8x512xf32> to vector<8x128xf32>
    %cst_86 = arith.constant 5.000000e-01 : f32
    %221 = vector.broadcast %cst_86 : f32 to vector<8x128xf32>
    %222 = arith.mulf %221, %220 : vector<8x128xf32>
    %223 = math.tanh %222 : vector<8x128xf32>
    %cst_87 = arith.constant 5.000000e-01 : f32
    %224 = vector.broadcast %cst_87 : f32 to vector<8x128xf32>
    %225 = arith.mulf %224, %223 : vector<8x128xf32>
    %cst_88 = arith.constant 5.000000e-01 : f32
    %226 = vector.broadcast %cst_88 : f32 to vector<8x128xf32>
    %227 = arith.addf %225, %226 : vector<8x128xf32>
    %228 = vector.extract_strided_slice %211 {offsets = [0, 256], sizes = [8, 128], strides = [1, 1]} : vector<8x512xf32> to vector<8x128xf32>
    %229 = math.tanh %228 : vector<8x128xf32>
    %230 = vector.extract_strided_slice %211 {offsets = [0, 384], sizes = [8, 128], strides = [1, 1]} : vector<8x512xf32> to vector<8x128xf32>
    %cst_89 = arith.constant 5.000000e-01 : f32
    %231 = vector.broadcast %cst_89 : f32 to vector<8x128xf32>
    %232 = arith.mulf %231, %230 : vector<8x128xf32>
    %233 = math.tanh %232 : vector<8x128xf32>
    %cst_90 = arith.constant 5.000000e-01 : f32
    %234 = vector.broadcast %cst_90 : f32 to vector<8x128xf32>
    %235 = arith.mulf %234, %233 : vector<8x128xf32>
    %cst_91 = arith.constant 5.000000e-01 : f32
    %236 = vector.broadcast %cst_91 : f32 to vector<8x128xf32>
    %237 = arith.addf %235, %236 : vector<8x128xf32>
    %238 = arith.mulf %227, %201 : vector<8x128xf32>
    %239 = arith.mulf %219, %229 : vector<8x128xf32>
    %240 = arith.addf %238, %239 : vector<8x128xf32>
    %241 = math.tanh %240 : vector<8x128xf32>
    %242 = arith.mulf %237, %241 : vector<8x128xf32>
    %c6_i32 = arith.constant 6 : i32
    %c8_i32_92 = arith.constant 8 : i32
    %243 = arith.muli %c6_i32, %c8_i32_92 : i32
    %244 = tpu.assume_multiple %243, 8 : i32
    %245 = arith.index_cast %244 : i32 to index
    %c0_93 = arith.constant 0 : index
    %246 = vector.load %arg7[%245, %c0_93] : memref<80x512xf32, #tpu.memory_space<vmem>>, vector<8x512xf32>
    %247 = vector.extract_strided_slice %242 {offsets = [0, 0], sizes = [8, 16], strides = [1, 1]} : vector<8x128xf32> to vector<8x16xf32>
    %c0_94 = arith.constant 0 : index
    %c0_95 = arith.constant 0 : index
    %248 = vector.load %arg3[%c0_94, %c0_95] : memref<16x512xf32, #tpu.memory_space<vmem>>, vector<16x512xf32>
    %cst_96 = arith.constant dense<0.000000e+00> : vector<8x512xf32>
    %249 = tpu.matmul %247, %248, %cst_96 {dimension_numbers = #tpu.dot_dimension_numbers<[1], [0], [0], [1], [0, 0, 1, 1], [], []>} : vector<8x16xf32>, vector<16x512xf32>, vector<8x512xf32> -> vector<8x512xf32>
    %250 = arith.addf %246, %249 : vector<8x512xf32>
    %251 = vector.extract_strided_slice %250 {offsets = [0, 0], sizes = [8, 128], strides = [1, 1]} : vector<8x512xf32> to vector<8x128xf32>
    %cst_97 = arith.constant 5.000000e-01 : f32
    %252 = vector.broadcast %cst_97 : f32 to vector<8x128xf32>
    %253 = arith.mulf %252, %251 : vector<8x128xf32>
    %254 = math.tanh %253 : vector<8x128xf32>
    %cst_98 = arith.constant 5.000000e-01 : f32
    %255 = vector.broadcast %cst_98 : f32 to vector<8x128xf32>
    %256 = arith.mulf %255, %254 : vector<8x128xf32>
    %cst_99 = arith.constant 5.000000e-01 : f32
    %257 = vector.broadcast %cst_99 : f32 to vector<8x128xf32>
    %258 = arith.addf %256, %257 : vector<8x128xf32>
    %259 = vector.extract_strided_slice %250 {offsets = [0, 128], sizes = [8, 128], strides = [1, 1]} : vector<8x512xf32> to vector<8x128xf32>
    %cst_100 = arith.constant 5.000000e-01 : f32
    %260 = vector.broadcast %cst_100 : f32 to vector<8x128xf32>
    %261 = arith.mulf %260, %259 : vector<8x128xf32>
    %262 = math.tanh %261 : vector<8x128xf32>
    %cst_101 = arith.constant 5.000000e-01 : f32
    %263 = vector.broadcast %cst_101 : f32 to vector<8x128xf32>
    %264 = arith.mulf %263, %262 : vector<8x128xf32>
    %cst_102 = arith.constant 5.000000e-01 : f32
    %265 = vector.broadcast %cst_102 : f32 to vector<8x128xf32>
    %266 = arith.addf %264, %265 : vector<8x128xf32>
    %267 = vector.extract_strided_slice %250 {offsets = [0, 256], sizes = [8, 128], strides = [1, 1]} : vector<8x512xf32> to vector<8x128xf32>
    %268 = math.tanh %267 : vector<8x128xf32>
    %269 = vector.extract_strided_slice %250 {offsets = [0, 384], sizes = [8, 128], strides = [1, 1]} : vector<8x512xf32> to vector<8x128xf32>
    %cst_103 = arith.constant 5.000000e-01 : f32
    %270 = vector.broadcast %cst_103 : f32 to vector<8x128xf32>
    %271 = arith.mulf %270, %269 : vector<8x128xf32>
    %272 = math.tanh %271 : vector<8x128xf32>
    %cst_104 = arith.constant 5.000000e-01 : f32
    %273 = vector.broadcast %cst_104 : f32 to vector<8x128xf32>
    %274 = arith.mulf %273, %272 : vector<8x128xf32>
    %cst_105 = arith.constant 5.000000e-01 : f32
    %275 = vector.broadcast %cst_105 : f32 to vector<8x128xf32>
    %276 = arith.addf %274, %275 : vector<8x128xf32>
    %277 = arith.mulf %266, %240 : vector<8x128xf32>
    %278 = arith.mulf %258, %268 : vector<8x128xf32>
    %279 = arith.addf %277, %278 : vector<8x128xf32>
    %280 = math.tanh %279 : vector<8x128xf32>
    %281 = arith.mulf %276, %280 : vector<8x128xf32>
    %c7_i32 = arith.constant 7 : i32
    %c8_i32_106 = arith.constant 8 : i32
    %282 = arith.muli %c7_i32, %c8_i32_106 : i32
    %283 = tpu.assume_multiple %282, 8 : i32
    %284 = arith.index_cast %283 : i32 to index
    %c0_107 = arith.constant 0 : index
    %285 = vector.load %arg7[%284, %c0_107] : memref<80x512xf32, #tpu.memory_space<vmem>>, vector<8x512xf32>
    %286 = vector.extract_strided_slice %281 {offsets = [0, 0], sizes = [8, 16], strides = [1, 1]} : vector<8x128xf32> to vector<8x16xf32>
    %c0_108 = arith.constant 0 : index
    %c0_109 = arith.constant 0 : index
    %287 = vector.load %arg3[%c0_108, %c0_109] : memref<16x512xf32, #tpu.memory_space<vmem>>, vector<16x512xf32>
    %cst_110 = arith.constant dense<0.000000e+00> : vector<8x512xf32>
    %288 = tpu.matmul %286, %287, %cst_110 {dimension_numbers = #tpu.dot_dimension_numbers<[1], [0], [0], [1], [0, 0, 1, 1], [], []>} : vector<8x16xf32>, vector<16x512xf32>, vector<8x512xf32> -> vector<8x512xf32>
    %289 = arith.addf %285, %288 : vector<8x512xf32>
    %290 = vector.extract_strided_slice %289 {offsets = [0, 0], sizes = [8, 128], strides = [1, 1]} : vector<8x512xf32> to vector<8x128xf32>
    %cst_111 = arith.constant 5.000000e-01 : f32
    %291 = vector.broadcast %cst_111 : f32 to vector<8x128xf32>
    %292 = arith.mulf %291, %290 : vector<8x128xf32>
    %293 = math.tanh %292 : vector<8x128xf32>
    %cst_112 = arith.constant 5.000000e-01 : f32
    %294 = vector.broadcast %cst_112 : f32 to vector<8x128xf32>
    %295 = arith.mulf %294, %293 : vector<8x128xf32>
    %cst_113 = arith.constant 5.000000e-01 : f32
    %296 = vector.broadcast %cst_113 : f32 to vector<8x128xf32>
    %297 = arith.addf %295, %296 : vector<8x128xf32>
    %298 = vector.extract_strided_slice %289 {offsets = [0, 128], sizes = [8, 128], strides = [1, 1]} : vector<8x512xf32> to vector<8x128xf32>
    %cst_114 = arith.constant 5.000000e-01 : f32
    %299 = vector.broadcast %cst_114 : f32 to vector<8x128xf32>
    %300 = arith.mulf %299, %298 : vector<8x128xf32>
    %301 = math.tanh %300 : vector<8x128xf32>
    %cst_115 = arith.constant 5.000000e-01 : f32
    %302 = vector.broadcast %cst_115 : f32 to vector<8x128xf32>
    %303 = arith.mulf %302, %301 : vector<8x128xf32>
    %cst_116 = arith.constant 5.000000e-01 : f32
    %304 = vector.broadcast %cst_116 : f32 to vector<8x128xf32>
    %305 = arith.addf %303, %304 : vector<8x128xf32>
    %306 = vector.extract_strided_slice %289 {offsets = [0, 256], sizes = [8, 128], strides = [1, 1]} : vector<8x512xf32> to vector<8x128xf32>
    %307 = math.tanh %306 : vector<8x128xf32>
    %308 = vector.extract_strided_slice %289 {offsets = [0, 384], sizes = [8, 128], strides = [1, 1]} : vector<8x512xf32> to vector<8x128xf32>
    %cst_117 = arith.constant 5.000000e-01 : f32
    %309 = vector.broadcast %cst_117 : f32 to vector<8x128xf32>
    %310 = arith.mulf %309, %308 : vector<8x128xf32>
    %311 = math.tanh %310 : vector<8x128xf32>
    %cst_118 = arith.constant 5.000000e-01 : f32
    %312 = vector.broadcast %cst_118 : f32 to vector<8x128xf32>
    %313 = arith.mulf %312, %311 : vector<8x128xf32>
    %cst_119 = arith.constant 5.000000e-01 : f32
    %314 = vector.broadcast %cst_119 : f32 to vector<8x128xf32>
    %315 = arith.addf %313, %314 : vector<8x128xf32>
    %316 = arith.mulf %305, %279 : vector<8x128xf32>
    %317 = arith.mulf %297, %307 : vector<8x128xf32>
    %318 = arith.addf %316, %317 : vector<8x128xf32>
    %319 = math.tanh %318 : vector<8x128xf32>
    %320 = arith.mulf %315, %319 : vector<8x128xf32>
    %c8_i32_120 = arith.constant 8 : i32
    %c8_i32_121 = arith.constant 8 : i32
    %321 = arith.muli %c8_i32_120, %c8_i32_121 : i32
    %322 = tpu.assume_multiple %321, 8 : i32
    %323 = arith.index_cast %322 : i32 to index
    %c0_122 = arith.constant 0 : index
    %324 = vector.load %arg7[%323, %c0_122] : memref<80x512xf32, #tpu.memory_space<vmem>>, vector<8x512xf32>
    %325 = vector.extract_strided_slice %320 {offsets = [0, 0], sizes = [8, 16], strides = [1, 1]} : vector<8x128xf32> to vector<8x16xf32>
    %c0_123 = arith.constant 0 : index
    %c0_124 = arith.constant 0 : index
    %326 = vector.load %arg3[%c0_123, %c0_124] : memref<16x512xf32, #tpu.memory_space<vmem>>, vector<16x512xf32>
    %cst_125 = arith.constant dense<0.000000e+00> : vector<8x512xf32>
    %327 = tpu.matmul %325, %326, %cst_125 {dimension_numbers = #tpu.dot_dimension_numbers<[1], [0], [0], [1], [0, 0, 1, 1], [], []>} : vector<8x16xf32>, vector<16x512xf32>, vector<8x512xf32> -> vector<8x512xf32>
    %328 = arith.addf %324, %327 : vector<8x512xf32>
    %329 = vector.extract_strided_slice %328 {offsets = [0, 0], sizes = [8, 128], strides = [1, 1]} : vector<8x512xf32> to vector<8x128xf32>
    %cst_126 = arith.constant 5.000000e-01 : f32
    %330 = vector.broadcast %cst_126 : f32 to vector<8x128xf32>
    %331 = arith.mulf %330, %329 : vector<8x128xf32>
    %332 = math.tanh %331 : vector<8x128xf32>
    %cst_127 = arith.constant 5.000000e-01 : f32
    %333 = vector.broadcast %cst_127 : f32 to vector<8x128xf32>
    %334 = arith.mulf %333, %332 : vector<8x128xf32>
    %cst_128 = arith.constant 5.000000e-01 : f32
    %335 = vector.broadcast %cst_128 : f32 to vector<8x128xf32>
    %336 = arith.addf %334, %335 : vector<8x128xf32>
    %337 = vector.extract_strided_slice %328 {offsets = [0, 128], sizes = [8, 128], strides = [1, 1]} : vector<8x512xf32> to vector<8x128xf32>
    %cst_129 = arith.constant 5.000000e-01 : f32
    %338 = vector.broadcast %cst_129 : f32 to vector<8x128xf32>
    %339 = arith.mulf %338, %337 : vector<8x128xf32>
    %340 = math.tanh %339 : vector<8x128xf32>
    %cst_130 = arith.constant 5.000000e-01 : f32
    %341 = vector.broadcast %cst_130 : f32 to vector<8x128xf32>
    %342 = arith.mulf %341, %340 : vector<8x128xf32>
    %cst_131 = arith.constant 5.000000e-01 : f32
    %343 = vector.broadcast %cst_131 : f32 to vector<8x128xf32>
    %344 = arith.addf %342, %343 : vector<8x128xf32>
    %345 = vector.extract_strided_slice %328 {offsets = [0, 256], sizes = [8, 128], strides = [1, 1]} : vector<8x512xf32> to vector<8x128xf32>
    %346 = math.tanh %345 : vector<8x128xf32>
    %347 = vector.extract_strided_slice %328 {offsets = [0, 384], sizes = [8, 128], strides = [1, 1]} : vector<8x512xf32> to vector<8x128xf32>
    %cst_132 = arith.constant 5.000000e-01 : f32
    %348 = vector.broadcast %cst_132 : f32 to vector<8x128xf32>
    %349 = arith.mulf %348, %347 : vector<8x128xf32>
    %350 = math.tanh %349 : vector<8x128xf32>
    %cst_133 = arith.constant 5.000000e-01 : f32
    %351 = vector.broadcast %cst_133 : f32 to vector<8x128xf32>
    %352 = arith.mulf %351, %350 : vector<8x128xf32>
    %cst_134 = arith.constant 5.000000e-01 : f32
    %353 = vector.broadcast %cst_134 : f32 to vector<8x128xf32>
    %354 = arith.addf %352, %353 : vector<8x128xf32>
    %355 = arith.mulf %344, %318 : vector<8x128xf32>
    %356 = arith.mulf %336, %346 : vector<8x128xf32>
    %357 = arith.addf %355, %356 : vector<8x128xf32>
    %358 = math.tanh %357 : vector<8x128xf32>
    %359 = arith.mulf %354, %358 : vector<8x128xf32>
    %c9_i32 = arith.constant 9 : i32
    %c8_i32_135 = arith.constant 8 : i32
    %360 = arith.muli %c9_i32, %c8_i32_135 : i32
    %361 = tpu.assume_multiple %360, 8 : i32
    %362 = arith.index_cast %361 : i32 to index
    %c0_136 = arith.constant 0 : index
    %363 = vector.load %arg7[%362, %c0_136] : memref<80x512xf32, #tpu.memory_space<vmem>>, vector<8x512xf32>
    %364 = vector.extract_strided_slice %359 {offsets = [0, 0], sizes = [8, 16], strides = [1, 1]} : vector<8x128xf32> to vector<8x16xf32>
    %c0_137 = arith.constant 0 : index
    %c0_138 = arith.constant 0 : index
    %365 = vector.load %arg3[%c0_137, %c0_138] : memref<16x512xf32, #tpu.memory_space<vmem>>, vector<16x512xf32>
    %cst_139 = arith.constant dense<0.000000e+00> : vector<8x512xf32>
    %366 = tpu.matmul %364, %365, %cst_139 {dimension_numbers = #tpu.dot_dimension_numbers<[1], [0], [0], [1], [0, 0, 1, 1], [], []>} : vector<8x16xf32>, vector<16x512xf32>, vector<8x512xf32> -> vector<8x512xf32>
    %367 = arith.addf %363, %366 : vector<8x512xf32>
    %368 = vector.extract_strided_slice %367 {offsets = [0, 0], sizes = [8, 128], strides = [1, 1]} : vector<8x512xf32> to vector<8x128xf32>
    %cst_140 = arith.constant 5.000000e-01 : f32
    %369 = vector.broadcast %cst_140 : f32 to vector<8x128xf32>
    %370 = arith.mulf %369, %368 : vector<8x128xf32>
    %371 = math.tanh %370 : vector<8x128xf32>
    %cst_141 = arith.constant 5.000000e-01 : f32
    %372 = vector.broadcast %cst_141 : f32 to vector<8x128xf32>
    %373 = arith.mulf %372, %371 : vector<8x128xf32>
    %cst_142 = arith.constant 5.000000e-01 : f32
    %374 = vector.broadcast %cst_142 : f32 to vector<8x128xf32>
    %375 = arith.addf %373, %374 : vector<8x128xf32>
    %376 = vector.extract_strided_slice %367 {offsets = [0, 128], sizes = [8, 128], strides = [1, 1]} : vector<8x512xf32> to vector<8x128xf32>
    %cst_143 = arith.constant 5.000000e-01 : f32
    %377 = vector.broadcast %cst_143 : f32 to vector<8x128xf32>
    %378 = arith.mulf %377, %376 : vector<8x128xf32>
    %379 = math.tanh %378 : vector<8x128xf32>
    %cst_144 = arith.constant 5.000000e-01 : f32
    %380 = vector.broadcast %cst_144 : f32 to vector<8x128xf32>
    %381 = arith.mulf %380, %379 : vector<8x128xf32>
    %cst_145 = arith.constant 5.000000e-01 : f32
    %382 = vector.broadcast %cst_145 : f32 to vector<8x128xf32>
    %383 = arith.addf %381, %382 : vector<8x128xf32>
    %384 = vector.extract_strided_slice %367 {offsets = [0, 256], sizes = [8, 128], strides = [1, 1]} : vector<8x512xf32> to vector<8x128xf32>
    %385 = math.tanh %384 : vector<8x128xf32>
    %386 = vector.extract_strided_slice %367 {offsets = [0, 384], sizes = [8, 128], strides = [1, 1]} : vector<8x512xf32> to vector<8x128xf32>
    %cst_146 = arith.constant 5.000000e-01 : f32
    %387 = vector.broadcast %cst_146 : f32 to vector<8x128xf32>
    %388 = arith.mulf %387, %386 : vector<8x128xf32>
    %389 = math.tanh %388 : vector<8x128xf32>
    %cst_147 = arith.constant 5.000000e-01 : f32
    %390 = vector.broadcast %cst_147 : f32 to vector<8x128xf32>
    %391 = arith.mulf %390, %389 : vector<8x128xf32>
    %cst_148 = arith.constant 5.000000e-01 : f32
    %392 = vector.broadcast %cst_148 : f32 to vector<8x128xf32>
    %393 = arith.addf %391, %392 : vector<8x128xf32>
    %394 = arith.mulf %383, %357 : vector<8x128xf32>
    %395 = arith.mulf %375, %385 : vector<8x128xf32>
    %396 = arith.addf %394, %395 : vector<8x128xf32>
    %397 = math.tanh %396 : vector<8x128xf32>
    %398 = arith.mulf %393, %397 : vector<8x128xf32>
    %c10_i32 = arith.constant 10 : i32
    %c0_149 = arith.constant 0 : index
    %c0_150 = arith.constant 0 : index
    %399 = vector.load %arg4[%c0_149, %c0_150] : memref<1x128xf32, #tpu.memory_space<vmem>>, vector<1x128xf32>
    %400 = vector.broadcast %399 : vector<1x128xf32> to vector<8x128xf32>
    %401 = arith.mulf %398, %400 : vector<8x128xf32>
    %cst_151 = arith.constant dense<0.000000e+00> : vector<8xf32>
    %402 = vector.multi_reduction <add>, %401, %cst_151 [1] : vector<8x128xf32> to vector<8xf32>
    %403 = vector.shape_cast %402 : vector<8xf32> to vector<8x1xf32>
    %c0_152 = arith.constant 0 : index
    %404 = memref.load %arg5[%c0_152] : memref<1xf32, #tpu.memory_space<smem>>
    %405 = vector.broadcast %404 : f32 to vector<8x1xf32>
    %406 = arith.addf %403, %405 : vector<8x1xf32>
    %407 = vector.shape_cast %406 : vector<8x1xf32> to vector<8x1xf32>
    %408 = vector.broadcast %407 : vector<8x1xf32> to vector<8x128xf32>
    %c0_153 = arith.constant 0 : index
    %c0_154 = arith.constant 0 : index
    %409 = vector.load %arg6[%c0_153, %c0_154] : memref<8x128xf32, #tpu.memory_space<vmem>>, vector<8x128xf32>
    tpu.vector_store %arg6[%c0_153, %c0_154], %408 {strides = array<i32>} : memref<8x128xf32, #tpu.memory_space<vmem>>, vector<8x128xf32>,
    return
  }
}

</mosaic_0001>

<llo_original>
// kernel: lstm_model_forward.1
$region0: #{lstm_model_forward.1}
  #allocation0 [shape = 'u32[]', space=smem, size = 0x4, offset = 0x4, fixed_abs, tag = 'smem constant byte address 0x4 - core index']
  #allocation1 [shape = 'u32[144,128]{1,0:T(1,128)}', space=vmem, size = 0x12000, scoped, tag = 'internal scratch']
  #allocation2 [shape = 'f32[80,512]{1,0:T(8,128)}', space=vmem, size = 0x28000, scoped, tag = 'scratch operand']
  #allocation3 [shape = 'f32[1]{0:T(128)S(6)}', space=smem, size = 0x200, scoped, tag = 'scoped memory for lstm_model_forward.1']
  %s0 = inlined_call_operand.vmem [shape: f32[80,16], index: 0, kind: input, shape index: {}]
  %s1 = inlined_call_operand.vmem [shape: f32[16,512], index: 1, kind: input, shape index: {}]
  %s2 = inlined_call_operand.hbm [shape: f32[1,512], index: 2, kind: input, shape index: {}]
  %s3 = inlined_call_operand.vmem [shape: f32[16,512], index: 3, kind: input, shape index: {}]
  %s4 = inlined_call_operand.vmem [shape: f32[1,128], index: 4, kind: input, shape index: {}]
  %s5 = inlined_call_operand.<no memory space> [shape: f32[1], index: 5, kind: input, shape index: {}]
  %s6 = inlined_call_operand.vmem [shape: f32[8,128], index: 6, kind: output, shape index: {}]
  %s7 = sld [smem:[#allocation0]]
  $region38: #{lstm_model_forward.1} parent=0
    _
  %s9 = ssub.s32 1, %s7
  %s10 = scalar_select 0, %s9, %s7
  %11 = sst [smem:[#allocation3]] %s5
  $region1: #{lstm_model_forward.1} parent=0
    #allocation4 [shape = 'u8[2048]{0}', space=vmem, size = 0x800, scoped, tag = 'input window, operand 2, single buffered']
    #allocation5 [shape = 's32[1]{0}', space=sflag, size = 0x4, scoped, tag = 'scoped memory for lstm_model_forward.1']
    %12 = vsyncpa [#allocation5], 0
    // Predicated region
    $region2: #{lstm_model_forward.1} parent=1 // pred_check
      _
    $region3: #{lstm_model_forward.1} parent=1 // pred_check_branch
      %14 = sbr.rel (0) target = $region5
    $region4: #{lstm_model_forward.1} parent=1 // pred_region
      _
    $region5: #{lstm_model_forward.1} parent=1 // pred_fallthru
      _
    // Predicated region
    $region6: #{lstm_model_forward.1} parent=1 // pred_check
      _
    $region7: #{lstm_model_forward.1} parent=1 // pred_check_branch
      %16 = sbr.rel (0) target = $region9
    $region8: #{lstm_model_forward.1} parent=1 // pred_region
      _
    $region9: #{lstm_model_forward.1} parent=1 // pred_fallthru
      _
    // Predicated region
    $region10: #{lstm_model_forward.1} parent=1 // pred_check
      _
    $region11: #{lstm_model_forward.1} parent=1 // pred_check_branch
      %18 = sbr.rel (0) target = $region13
    $region12: #{lstm_model_forward.1} parent=1 // pred_region
      %s20 = ssub.s32 64, 64
      %21 = vsyncadd [#allocation5], %s20
      %s23 = sshll.u32 [#allocation4], 4
      %s24 = int_to_ptr.vmem [resolvable:$true] %s23
      %26 = dma.hbm_to_vmem [thread:$0]  %s2, 64, %s24, [#allocation5]
    $region13: #{lstm_model_forward.1} parent=1 // pred_fallthru
      _
    // Predicated region
    $region14: #{lstm_model_forward.1} parent=1 // pred_check
      _
    $region15: #{lstm_model_forward.1} parent=1 // pred_check_branch
      %28 = sbr.rel (0) target = $region17
    $region16: #{lstm_model_forward.1} parent=1 // pred_region
      _
    $region17: #{lstm_model_forward.1} parent=1 // pred_fallthru
      _
    // Predicated region
    $region18: #{lstm_model_forward.1} parent=1 // pred_check
      _
    $region19: #{lstm_model_forward.1} parent=1 // pred_check_branch
      %30 = sbr.rel (0) target = $region21
    $region20: #{lstm_model_forward.1} parent=1 // pred_region
      _
    $region21: #{lstm_model_forward.1} parent=1 // pred_fallthru
      _
    // Predicated region
    $region22: #{lstm_model_forward.1} parent=1 // pred_check
      _
    $region23: #{lstm_model_forward.1} parent=1 // pred_check_branch
      %32 = sbr.rel (0) target = $region25
    $region24: #{lstm_model_forward.1} parent=1 // pred_region
      _
    $region25: #{lstm_model_forward.1} parent=1 // pred_fallthru
      _
    // Predicated region
    $region26: #{lstm_model_forward.1} parent=1 // pred_check
      _
    $region27: #{lstm_model_forward.1} parent=1 // pred_check_branch
      %34 = sbr.rel (0) target = $region29
    $region28: #{lstm_model_forward.1} parent=1 // pred_region
      %35 = dma.done [#allocation5], 64
    $region29: #{lstm_model_forward.1} parent=1 // pred_fallthru
      _
    %v36 = vld [vmem:[%s0] sm:$0xff]
    %v37 = vld [vmem:[%s0 + $0x8] sm:$0xff]
    %v38 = vld [vmem:[%s0 + $0x10] sm:$0xff]
    %v39 = vld [vmem:[%s0 + $0x18] sm:$0xff]
    %v40 = vld [vmem:[%s0 + $0x20] sm:$0xff]
    %v41 = vld [vmem:[%s0 + $0x28] sm:$0xff]
    %v42 = vld [vmem:[%s0 + $0x30] sm:$0xff]
    %v43 = vld [vmem:[%s0 + $0x38] sm:$0xff]
    %v44 = vld [vmem:[%s0 + $0x40] sm:$0xff]
    %v45 = vld [vmem:[%s0 + $0x48] sm:$0xff]
    %v46 = vld [vmem:[%s1] sm:$0xff]
    %v47 = vld [vmem:[%s1 + $0x8] sm:$0xff]
    %v48 = vld [vmem:[%s1 + $0x10] sm:$0xff]
    %v49 = vld [vmem:[%s1 + $0x18] sm:$0xff]
    %v50 = vld [vmem:[%s1 + $0x20] sm:$0xff]
    %v51 = vld [vmem:[%s1 + $0x28] sm:$0xff]
    %v52 = vld [vmem:[%s1 + $0x30] sm:$0xff]
    %v53 = vld [vmem:[%s1 + $0x38] sm:$0xff]
    %v54 = vld [vmem:[#allocation4] sm:$0xf]
    %v56 = vlaneseq
    %v57 = vshrl.u32 %v56, 7
    %v58 = vsub.s32 0, %v57
    %v59 = vrot.slane %v54, %v58
    %v60 = vlaneseq
    %v61 = vshrl.u32 %v60, 7
    %v62 = vsub.s32 1, %v61
    %v63 = vrot.slane %v54, %v62
    %v64 = vlaneseq
    %v65 = vshrl.u32 %v64, 7
    %v66 = vsub.s32 2, %v65
    %v67 = vrot.slane %v54, %v66
    %v68 = vlaneseq
    %v69 = vshrl.u32 %v68, 7
    %v70 = vsub.s32 3, %v69
    %v71 = vrot.slane %v54, %v70
    %vm76 = vcmask 130048
    %v78 = vsel %vm76, %v36, 0
    %v81 = vsel %vm76, %v37, 0
    %v84 = vsel %vm76, %v38, 0
    %v87 = vsel %vm76, %v39, 0
    %v90 = vsel %vm76, %v40, 0
    %v93 = vsel %vm76, %v41, 0
    %v96 = vsel %vm76, %v42, 0
    %v99 = vsel %vm76, %v43, 0
    %v102 = vsel %vm76, %v44, 0
    %v105 = vsel %vm76, %v45, 0
    %107 = vmatprep.subr.mxu0 0.0
    %108 = vmatpush1.msra.mxu0 0.0
    %109 = vmatprep.subr.mxu0 0.0
    %110 = vmatpush1.msra.mxu0 0.0
    %111 = vmatprep.subr.mxu0 0.0
    %112 = vmatpush1.msra.mxu0 0.0
    %113 = vmatprep.subr.mxu0 0.0
    %114 = vmatpush1.msra.mxu0 0.0
    %115 = vmatprep.subr.mxu0 0.0
    %116 = vmatpush1.msra.mxu0 0.0
    %117 = vmatprep.subr.mxu0 0.0
    %118 = vmatpush1.msra.mxu0 0.0
    %119 = vmatprep.subr.mxu0 0.0
    %120 = vmatpush1.msra.mxu0 0.0
    %121 = vmatprep.subr.mxu0 0.0
    %122 = vmatpush1.msra.mxu0 0.0
    %123 = vmatprep.subr.mxu0 0.0
    %124 = vmatpush1.msra.mxu0 0.0
    %125 = vmatprep.subr.mxu0 0.0
    %126 = vmatpush1.msra.mxu0 0.0
    %127 = vmatprep.subr.mxu0 0.0
    %128 = vmatpush1.msra.mxu0 0.0
    %129 = vmatprep.subr.mxu0 0.0
    %130 = vmatpush1.msra.mxu0 0.0
    %131 = vmatprep.subr.mxu0 0.0
    %132 = vmatpush1.msra.mxu0 0.0
    %133 = vmatprep.subr.mxu0 0.0
    %134 = vmatpush1.msra.mxu0 0.0
    %135 = vmatprep.subr.mxu0 %v51
    %136 = vmatpush1.msra.mxu0 %v50
    %137 = vmatprep.subr.mxu0 %v47
    %138 = vmatpush1.msra.mxu0 %v46
    %139 = vmatprep.subr.mxu0 0.0
    %140 = vmatpush2.msra.mxu0 0.0
    %141 = vmatprep.subr.mxu0 0.0
    %142 = vmatpush2.msra.mxu0 0.0
    %143 = vmatprep.subr.mxu0 0.0
    %144 = vmatpush2.msra.mxu0 0.0
    %145 = vmatprep.subr.mxu0 0.0
    %146 = vmatpush2.msra.mxu0 0.0
    %147 = vmatprep.subr.mxu0 0.0
    %148 = vmatpush2.msra.mxu0 0.0
    %149 = vmatprep.subr.mxu0 0.0
    %150 = vmatpush2.msra.mxu0 0.0
    %151 = vmatprep.subr.mxu0 0.0
    %152 = vmatpush2.msra.mxu0 0.0
    %153 = vmatprep.subr.mxu0 0.0
    %154 = vmatpush2.msra.mxu0 0.0
    %155 = vmatprep.subr.mxu0 0.0
    %156 = vmatpush2.msra.mxu0 0.0
    %157 = vmatprep.subr.mxu0 0.0
    %158 = vmatpush2.msra.mxu0 0.0
    %159 = vmatprep.subr.mxu0 0.0
    %160 = vmatpush2.msra.mxu0 0.0
    %161 = vmatprep.subr.mxu0 0.0
    %162 = vmatpush2.msra.mxu0 0.0
    %163 = vmatprep.subr.mxu0 0.0
    %164 = vmatpush2.msra.mxu0 0.0
    %165 = vmatprep.subr.mxu0 0.0
    %166 = vmatpush2.msra.mxu0 0.0
    %167 = vmatprep.subr.mxu0 0.0
    %168 = vmatpush2.msra.mxu0 0.0
    %169 = vmatprep.subr.mxu0 0.0
    %170 = vmatpush2.msra.mxu0 0.0
    %171 = vmatprep.mubr.f32.mxu0 0.0
    %172 = vmatmul.mubr.f32.gmra.mxu0 %v78
    %v173 = vpop.f32.mrf.mxu0
    %v174 = vadd.f32 %v59, %v173
    %v175 = vpop.f32.mrf.mxu0
    %v176 = vadd.f32 %v63, %v175
    %177 = vmatprep.mubr.f32.mxu0 0.0
    %178 = vmatmul.mubr.f32.gmra.mxu0 %v81
    %v179 = vpop.f32.mrf.mxu0
    %v180 = vadd.f32 %v59, %v179
    %v181 = vpop.f32.mrf.mxu0
    %v182 = vadd.f32 %v63, %v181
    %183 = vmatprep.mubr.f32.mxu0 0.0
    %184 = vmatmul.mubr.f32.gmra.mxu0 %v84
    %v185 = vpop.f32.mrf.mxu0
    %v186 = vadd.f32 %v59, %v185
    %v187 = vpop.f32.mrf.mxu0
    %v188 = vadd.f32 %v63, %v187
    %189 = vmatprep.mubr.f32.mxu0 0.0
    %190 = vmatmul.mubr.f32.gmra.mxu0 %v87
    %v191 = vpop.f32.mrf.mxu0
    %v192 = vadd.f32 %v59, %v191
    %v193 = vpop.f32.mrf.mxu0
    %v194 = vadd.f32 %v63, %v193
    %195 = vmatprep.mubr.f32.mxu0 0.0
    %196 = vmatmul.mubr.f32.gmra.mxu0 %v90
    %v197 = vpop.f32.mrf.mxu0
    %v198 = vadd.f32 %v59, %v197
    %v199 = vpop.f32.mrf.mxu0
    %v200 = vadd.f32 %v63, %v199
    %201 = vmatprep.mubr.f32.mxu0 0.0
    %202 = vmatmul.mubr.f32.gmra.mxu0 %v93
    %v203 = vpop.f32.mrf.mxu0
    %v204 = vadd.f32 %v59, %v203
    %v205 = vpop.f32.mrf.mxu0
    %v206 = vadd.f32 %v63, %v205
    %207 = vmatprep.mubr.f32.mxu0 0.0
    %208 = vmatmul.mubr.f32.gmra.mxu0 %v96
    %v209 = vpop.f32.mrf.mxu0
    %v210 = vadd.f32 %v59, %v209
    %v211 = vpop.f32.mrf.mxu0
    %v212 = vadd.f32 %v63, %v211
    %213 = vmatprep.mubr.f32.mxu0 0.0
    %214 = vmatmul.mubr.f32.gmra.mxu0 %v99
    %v215 = vpop.f32.mrf.mxu0
    %v216 = vadd.f32 %v59, %v215
    %v217 = vpop.f32.mrf.mxu0
    %v218 = vadd.f32 %v63, %v217
    %219 = vmatprep.mubr.f32.mxu0 0.0
    %220 = vmatmul.mubr.f32.gmra.mxu0 %v102
    %v221 = vpop.f32.mrf.mxu0
    %v222 = vadd.f32 %v59, %v221
    %v223 = vpop.f32.mrf.mxu0
    %v224 = vadd.f32 %v63, %v223
    %225 = vmatprep.mubr.f32.mxu0 0.0
    %226 = vmatmul.mubr.f32.gmra.mxu0 %v105
    %v227 = vpop.f32.mrf.mxu0
    %v228 = vadd.f32 %v59, %v227
    %v229 = vpop.f32.mrf.mxu0
    %v230 = vadd.f32 %v63, %v229
    %231 = vdwg.mxu0
    %232 = vmatprep.subr.mxu0 0.0
    %233 = vmatpush1.msra.mxu0 0.0
    %234 = vmatprep.subr.mxu0 0.0
    %235 = vmatpush1.msra.mxu0 0.0
    %236 = vmatprep.subr.mxu0 0.0
    %237 = vmatpush1.msra.mxu0 0.0
    %238 = vmatprep.subr.mxu0 0.0
    %239 = vmatpush1.msra.mxu0 0.0
    %240 = vmatprep.subr.mxu0 0.0
    %241 = vmatpush1.msra.mxu0 0.0
    %242 = vmatprep.subr.mxu0 0.0
    %243 = vmatpush1.msra.mxu0 0.0
    %244 = vmatprep.subr.mxu0 0.0
    %245 = vmatpush1.msra.mxu0 0.0
    %246 = vmatprep.subr.mxu0 0.0
    %247 = vmatpush1.msra.mxu0 0.0
    %248 = vmatprep.subr.mxu0 0.0
    %249 = vmatpush1.msra.mxu0 0.0
    %250 = vmatprep.subr.mxu0 0.0
    %251 = vmatpush1.msra.mxu0 0.0
    %252 = vmatprep.subr.mxu0 0.0
    %253 = vmatpush1.msra.mxu0 0.0
    %254 = vmatprep.subr.mxu0 0.0
    %255 = vmatpush1.msra.mxu0 0.0
    %256 = vmatprep.subr.mxu0 0.0
    %257 = vmatpush1.msra.mxu0 0.0
    %258 = vmatprep.subr.mxu0 0.0
    %259 = vmatpush1.msra.mxu0 0.0
    %260 = vmatprep.subr.mxu0 %v53
    %261 = vmatpush1.msra.mxu0 %v52
    %262 = vmatprep.subr.mxu0 %v49
    %263 = vmatpush1.msra.mxu0 %v48
    %264 = vmatprep.subr.mxu0 0.0
    %265 = vmatpush2.msra.mxu0 0.0
    %266 = vmatprep.subr.mxu0 0.0
    %267 = vmatpush2.msra.mxu0 0.0
    %268 = vmatprep.subr.mxu0 0.0
    %269 = vmatpush2.msra.mxu0 0.0
    %270 = vmatprep.subr.mxu0 0.0
    %271 = vmatpush2.msra.mxu0 0.0
    %272 = vmatprep.subr.mxu0 0.0
    %273 = vmatpush2.msra.mxu0 0.0
    %274 = vmatprep.subr.mxu0 0.0
    %275 = vmatpush2.msra.mxu0 0.0
    %276 = vmatprep.subr.mxu0 0.0
    %277 = vmatpush2.msra.mxu0 0.0
    %278 = vmatprep.subr.mxu0 0.0
    %279 = vmatpush2.msra.mxu0 0.0
    %280 = vmatprep.subr.mxu0 0.0
    %281 = vmatpush2.msra.mxu0 0.0
    %282 = vmatprep.subr.mxu0 0.0
    %283 = vmatpush2.msra.mxu0 0.0
    %284 = vmatprep.subr.mxu0 0.0
    %285 = vmatpush2.msra.mxu0 0.0
    %286 = vmatprep.subr.mxu0 0.0
    %287 = vmatpush2.msra.mxu0 0.0
    %288 = vmatprep.subr.mxu0 0.0
    %289 = vmatpush2.msra.mxu0 0.0
    %290 = vmatprep.subr.mxu0 0.0
    %291 = vmatpush2.msra.mxu0 0.0
    %292 = vmatprep.subr.mxu0 0.0
    %293 = vmatpush2.msra.mxu0 0.0
    %294 = vmatprep.subr.mxu0 0.0
    %295 = vmatpush2.msra.mxu0 0.0
    %296 = vmatprep.mubr.f32.mxu0 0.0
    %297 = vmatmul.mubr.f32.gmra.mxu0 %v78
    %v298 = vpop.f32.mrf.mxu0
    %v299 = vadd.f32 %v67, %v298
    %v300 = vpop.f32.mrf.mxu0
    %v301 = vadd.f32 %v71, %v300
    %302 = vmatprep.mubr.f32.mxu0 0.0
    %303 = vmatmul.mubr.f32.gmra.mxu0 %v81
    %v304 = vpop.f32.mrf.mxu0
    %v305 = vadd.f32 %v67, %v304
    %v306 = vpop.f32.mrf.mxu0
    %v307 = vadd.f32 %v71, %v306
    %308 = vmatprep.mubr.f32.mxu0 0.0
    %309 = vmatmul.mubr.f32.gmra.mxu0 %v84
    %v310 = vpop.f32.mrf.mxu0
    %v311 = vadd.f32 %v67, %v310
    %v312 = vpop.f32.mrf.mxu0
    %v313 = vadd.f32 %v71, %v312
    %314 = vmatprep.mubr.f32.mxu0 0.0
    %315 = vmatmul.mubr.f32.gmra.mxu0 %v87
    %v316 = vpop.f32.mrf.mxu0
    %v317 = vadd.f32 %v67, %v316
    %v318 = vpop.f32.mrf.mxu0
    %v319 = vadd.f32 %v71, %v318
    %320 = vmatprep.mubr.f32.mxu0 0.0
    %321 = vmatmul.mubr.f32.gmra.mxu0 %v90
    %v322 = vpop.f32.mrf.mxu0
    %v323 = vadd.f32 %v67, %v322
    %v324 = vpop.f32.mrf.mxu0
    %v325 = vadd.f32 %v71, %v324
    %326 = vmatprep.mubr.f32.mxu0 0.0
    %327 = vmatmul.mubr.f32.gmra.mxu0 %v93
    %v328 = vpop.f32.mrf.mxu0
    %v329 = vadd.f32 %v67, %v328
    %v330 = vpop.f32.mrf.mxu0
    %v331 = vadd.f32 %v71, %v330
    %332 = vmatprep.mubr.f32.mxu0 0.0
    %333 = vmatmul.mubr.f32.gmra.mxu0 %v96
    %v334 = vpop.f32.mrf.mxu0
    %v335 = vadd.f32 %v67, %v334
    %v336 = vpop.f32.mrf.mxu0
    %v337 = vadd.f32 %v71, %v336
    %338 = vmatprep.mubr.f32.mxu0 0.0
    %339 = vmatmul.mubr.f32.gmra.mxu0 %v99
    %v340 = vpop.f32.mrf.mxu0
    %v341 = vadd.f32 %v67, %v340
    %v342 = vpop.f32.mrf.mxu0
    %v343 = vadd.f32 %v71, %v342
    %344 = vmatprep.mubr.f32.mxu0 0.0
    %345 = vmatmul.mubr.f32.gmra.mxu0 %v102
    %v346 = vpop.f32.mrf.mxu0
    %v347 = vadd.f32 %v67, %v346
    %v348 = vpop.f32.mrf.mxu0
    %v349 = vadd.f32 %v71, %v348
    %350 = vmatprep.mubr.f32.mxu0 0.0
    %351 = vmatmul.mubr.f32.gmra.mxu0 %v105
    %v352 = vpop.f32.mrf.mxu0
    %v353 = vadd.f32 %v67, %v352
    %v354 = vpop.f32.mrf.mxu0
    %v355 = vadd.f32 %v71, %v354
    %356 = vdwg.mxu0
    %357 = vst [vmem:[#allocation2] sm:$0xff] %v174
    %358 = vst [vmem:[#allocation2 + $0x8] sm:$0xff] %v176
    %359 = vst [vmem:[#allocation2 + $0x10] sm:$0xff] %v299
    %360 = vst [vmem:[#allocation2 + $0x18] sm:$0xff] %v301
    %361 = vst [vmem:[#allocation2 + $0x20] sm:$0xff] %v180
    %362 = vst [vmem:[#allocation2 + $0x28] sm:$0xff] %v182
    %363 = vst [vmem:[#allocation2 + $0x30] sm:$0xff] %v305
    %364 = vst [vmem:[#allocation2 + $0x38] sm:$0xff] %v307
    %365 = vst [vmem:[#allocation2 + $0x40] sm:$0xff] %v186
    %366 = vst [vmem:[#allocation2 + $0x48] sm:$0xff] %v188
    %367 = vst [vmem:[#allocation2 + $0x50] sm:$0xff] %v311
    %368 = vst [vmem:[#allocation2 + $0x58] sm:$0xff] %v313
    %369 = vst [vmem:[#allocation2 + $0x60] sm:$0xff] %v192
    %370 = vst [vmem:[#allocation2 + $0x68] sm:$0xff] %v194
    %371 = vst [vmem:[#allocation2 + $0x70] sm:$0xff] %v317
    %372 = vst [vmem:[#allocation2 + $0x78] sm:$0xff] %v319
    %373 = vst [vmem:[#allocation2 + $0x80] sm:$0xff] %v198
    %374 = vst [vmem:[#allocation2 + $0x88] sm:$0xff] %v200
    %375 = vst [vmem:[#allocation2 + $0x90] sm:$0xff] %v323
    %376 = vst [vmem:[#allocation2 + $0x98] sm:$0xff] %v325
    %377 = vst [vmem:[#allocation2 + $0xa0] sm:$0xff] %v204
    %378 = vst [vmem:[#allocation2 + $0xa8] sm:$0xff] %v206
    %379 = vst [vmem:[#allocation2 + $0xb0] sm:$0xff] %v329
    %380 = vst [vmem:[#allocation2 + $0xb8] sm:$0xff] %v331
    %381 = vst [vmem:[#allocation2 + $0xc0] sm:$0xff] %v210
    %382 = vst [vmem:[#allocation2 + $0xc8] sm:$0xff] %v212
    %383 = vst [vmem:[#allocation2 + $0xd0] sm:$0xff] %v335
    %384 = vst [vmem:[#allocation2 + $0xd8] sm:$0xff] %v337
    %385 = vst [vmem:[#allocation2 + $0xe0] sm:$0xff] %v216
    %386 = vst [vmem:[#allocation2 + $0xe8] sm:$0xff] %v218
    %387 = vst [vmem:[#allocation2 + $0xf0] sm:$0xff] %v341
    %388 = vst [vmem:[#allocation2 + $0xf8] sm:$0xff] %v343
    %389 = vst [vmem:[#allocation2 + $0x100] sm:$0xff] %v222
    %390 = vst [vmem:[#allocation2 + $0x108] sm:$0xff] %v224
    %391 = vst [vmem:[#allocation2 + $0x110] sm:$0xff] %v347
    %392 = vst [vmem:[#allocation2 + $0x118] sm:$0xff] %v349
    %393 = vst [vmem:[#allocation2 + $0x120] sm:$0xff] %v228
    %394 = vst [vmem:[#allocation2 + $0x128] sm:$0xff] %v230
    %395 = vst [vmem:[#allocation2 + $0x130] sm:$0xff] %v353
    %396 = vst [vmem:[#allocation2 + $0x138] sm:$0xff] %v355
    %s397 = smul.u32 0, 4
    %s398 = smul.addr %s397, 8
    %s399 = scalar_lea.vmem [#allocation2], %s398
    %v400 = vld [vmem:[%s399] sm:$0xff]
    %v401 = vld [vmem:[%s399 + $0x8] sm:$0xff]
    %v402 = vld [vmem:[%s399 + $0x10] sm:$0xff]
    %v403 = vld [vmem:[%s399 + $0x18] sm:$0xff]
    %v404 = vld [vmem:[%s3] sm:$0xff]
    %v405 = vld [vmem:[%s3 + $0x8] sm:$0xff]
    %v406 = vld [vmem:[%s3 + $0x10] sm:$0xff]
    %v407 = vld [vmem:[%s3 + $0x18] sm:$0xff]
    %v408 = vld [vmem:[%s3 + $0x20] sm:$0xff]
    %v409 = vld [vmem:[%s3 + $0x28] sm:$0xff]
    %v410 = vld [vmem:[%s3 + $0x30] sm:$0xff]
    %v411 = vld [vmem:[%s3 + $0x38] sm:$0xff]
    %v413 = vsel %vm76, 0.0, 0
    %415 = vmatprep.subr.mxu0 0.0
    %416 = vmatpush1.msra.mxu0 0.0
    %417 = vmatprep.subr.mxu0 0.0
    %418 = vmatpush1.msra.mxu0 0.0
    %419 = vmatprep.subr.mxu0 0.0
    %420 = vmatpush1.msra.mxu0 0.0
    %421 = vmatprep.subr.mxu0 0.0
    %422 = vmatpush1.msra.mxu0 0.0
    %423 = vmatprep.subr.mxu0 0.0
    %424 = vmatpush1.msra.mxu0 0.0
    %425 = vmatprep.subr.mxu0 0.0
    %426 = vmatpush1.msra.mxu0 0.0
    %427 = vmatprep.subr.mxu0 0.0
    %428 = vmatpush1.msra.mxu0 0.0
    %429 = vmatprep.subr.mxu0 0.0
    %430 = vmatpush1.msra.mxu0 0.0
    %431 = vmatprep.subr.mxu0 0.0
    %432 = vmatpush1.msra.mxu0 0.0
    %433 = vmatprep.subr.mxu0 0.0
    %434 = vmatpush1.msra.mxu0 0.0
    %435 = vmatprep.subr.mxu0 0.0
    %436 = vmatpush1.msra.mxu0 0.0
    %437 = vmatprep.subr.mxu0 0.0
    %438 = vmatpush1.msra.mxu0 0.0
    %439 = vmatprep.subr.mxu0 0.0
    %440 = vmatpush1.msra.mxu0 0.0
    %441 = vmatprep.subr.mxu0 0.0
    %442 = vmatpush1.msra.mxu0 0.0
    %443 = vmatprep.subr.mxu0 %v409
    %444 = vmatpush1.msra.mxu0 %v408
    %445 = vmatprep.subr.mxu0 %v405
    %446 = vmatpush1.msra.mxu0 %v404
    %447 = vmatprep.subr.mxu0 0.0
    %448 = vmatpush2.msra.mxu0 0.0
    %449 = vmatprep.subr.mxu0 0.0
    %450 = vmatpush2.msra.mxu0 0.0
    %451 = vmatprep.subr.mxu0 0.0
    %452 = vmatpush2.msra.mxu0 0.0
    %453 = vmatprep.subr.mxu0 0.0
    %454 = vmatpush2.msra.mxu0 0.0
    %455 = vmatprep.subr.mxu0 0.0
    %456 = vmatpush2.msra.mxu0 0.0
    %457 = vmatprep.subr.mxu0 0.0
    %458 = vmatpush2.msra.mxu0 0.0
    %459 = vmatprep.subr.mxu0 0.0
    %460 = vmatpush2.msra.mxu0 0.0
    %461 = vmatprep.subr.mxu0 0.0
    %462 = vmatpush2.msra.mxu0 0.0
    %463 = vmatprep.subr.mxu0 0.0
    %464 = vmatpush2.msra.mxu0 0.0
    %465 = vmatprep.subr.mxu0 0.0
    %466 = vmatpush2.msra.mxu0 0.0
    %467 = vmatprep.subr.mxu0 0.0
    %468 = vmatpush2.msra.mxu0 0.0
    %469 = vmatprep.subr.mxu0 0.0
    %470 = vmatpush2.msra.mxu0 0.0
    %471 = vmatprep.subr.mxu0 0.0
    %472 = vmatpush2.msra.mxu0 0.0
    %473 = vmatprep.subr.mxu0 0.0
    %474 = vmatpush2.msra.mxu0 0.0
    %475 = vmatprep.subr.mxu0 0.0
    %476 = vmatpush2.msra.mxu0 0.0
    %477 = vmatprep.subr.mxu0 0.0
    %478 = vmatpush2.msra.mxu0 0.0
    %479 = vmatprep.mubr.f32.mxu0 0.0
    %480 = vmatmul.mubr.f32.gmra.mxu0 %v413
    %v481 = vpop.f32.mrf.mxu0
    %v482 = vadd.f32 0.0, %v481
    %v483 = vpop.f32.mrf.mxu0
    %v484 = vadd.f32 0.0, %v483
    %485 = vdwg.mxu0
    %486 = vmatprep.subr.mxu0 0.0
    %487 = vmatpush1.msra.mxu0 0.0
    %488 = vmatprep.subr.mxu0 0.0
    %489 = vmatpush1.msra.mxu0 0.0
    %490 = vmatprep.subr.mxu0 0.0
    %491 = vmatpush1.msra.mxu0 0.0
    %492 = vmatprep.subr.mxu0 0.0
    %493 = vmatpush1.msra.mxu0 0.0
    %494 = vmatprep.subr.mxu0 0.0
    %495 = vmatpush1.msra.mxu0 0.0
    %496 = vmatprep.subr.mxu0 0.0
    %497 = vmatpush1.msra.mxu0 0.0
    %498 = vmatprep.subr.mxu0 0.0
    %499 = vmatpush1.msra.mxu0 0.0
    %500 = vmatprep.subr.mxu0 0.0
    %501 = vmatpush1.msra.mxu0 0.0
    %502 = vmatprep.subr.mxu0 0.0
    %503 = vmatpush1.msra.mxu0 0.0
    %504 = vmatprep.subr.mxu0 0.0
    %505 = vmatpush1.msra.mxu0 0.0
    %506 = vmatprep.subr.mxu0 0.0
    %507 = vmatpush1.msra.mxu0 0.0
    %508 = vmatprep.subr.mxu0 0.0
    %509 = vmatpush1.msra.mxu0 0.0
    %510 = vmatprep.subr.mxu0 0.0
    %511 = vmatpush1.msra.mxu0 0.0
    %512 = vmatprep.subr.mxu0 0.0
    %513 = vmatpush1.msra.mxu0 0.0
    %514 = vmatprep.subr.mxu0 %v411
    %515 = vmatpush1.msra.mxu0 %v410
    %516 = vmatprep.subr.mxu0 %v407
    %517 = vmatpush1.msra.mxu0 %v406
    %518 = vmatprep.subr.mxu0 0.0
    %519 = vmatpush2.msra.mxu0 0.0
    %520 = vmatprep.subr.mxu0 0.0
    %521 = vmatpush2.msra.mxu0 0.0
    %522 = vmatprep.subr.mxu0 0.0
    %523 = vmatpush2.msra.mxu0 0.0
    %524 = vmatprep.subr.mxu0 0.0
    %525 = vmatpush2.msra.mxu0 0.0
    %526 = vmatprep.subr.mxu0 0.0
    %527 = vmatpush2.msra.mxu0 0.0
    %528 = vmatprep.subr.mxu0 0.0
    %529 = vmatpush2.msra.mxu0 0.0
    %530 = vmatprep.subr.mxu0 0.0
    %531 = vmatpush2.msra.mxu0 0.0
    %532 = vmatprep.subr.mxu0 0.0
    %533 = vmatpush2.msra.mxu0 0.0
    %534 = vmatprep.subr.mxu0 0.0
    %535 = vmatpush2.msra.mxu0 0.0
    %536 = vmatprep.subr.mxu0 0.0
    %537 = vmatpush2.msra.mxu0 0.0
    %538 = vmatprep.subr.mxu0 0.0
    %539 = vmatpush2.msra.mxu0 0.0
    %540 = vmatprep.subr.mxu0 0.0
    %541 = vmatpush2.msra.mxu0 0.0
    %542 = vmatprep.subr.mxu0 0.0
    %543 = vmatpush2.msra.mxu0 0.0
    %544 = vmatprep.subr.mxu0 0.0
    %545 = vmatpush2.msra.mxu0 0.0
    %546 = vmatprep.subr.mxu0 0.0
    %547 = vmatpush2.msra.mxu0 0.0
    %548 = vmatprep.subr.mxu0 0.0
    %549 = vmatpush2.msra.mxu0 0.0
    %550 = vmatprep.mubr.f32.mxu0 0.0
    %551 = vmatmul.mubr.f32.gmra.mxu0 %v413
    %v552 = vpop.f32.mrf.mxu0
    %v553 = vadd.f32 0.0, %v552
    %v554 = vpop.f32.mrf.mxu0
    %v555 = vadd.f32 0.0, %v554
    %556 = vdwg.mxu0
    %v557 = vadd.f32 %v400, %v482
    %v558 = vadd.f32 %v401, %v484
    %v559 = vadd.f32 %v402, %v553
    %v560 = vadd.f32 %v403, %v555
    %v561 = vmul.f32 %v557, 0.5
    %v562 = vtanh.pop %v561
    %v563 = vmul.f32 %v562, 0.5
    %v564 = vadd.f32 %v563, 0.5
    %v565 = vmul.f32 %v558, 0.5
    %v566 = vtanh.pop %v565
    %v567 = vmul.f32 %v566, 0.5
    %v568 = vadd.f32 %v567, 0.5
    %v569 = vtanh.pop %v559
    %v570 = vmul.f32 %v560, 0.5
    %v571 = vtanh.pop %v570
    %v572 = vmul.f32 %v571, 0.5
    %v573 = vadd.f32 %v572, 0.5
    %v574 = vmul.f32 %v568, 0.0
    %v575 = vmul.f32 %v564, %v569
    %v576 = vadd.f32 %v574, %v575
    %v577 = vtanh.pop %v576
    %v578 = vmul.f32 %v573, %v577
    %s579 = smul.u32 1, 4
    %s580 = smul.addr %s579, 8
    %s581 = scalar_lea.vmem [#allocation2], %s580
    %v582 = vld [vmem:[%s581] sm:$0xff]
    %v583 = vld [vmem:[%s581 + $0x8] sm:$0xff]
    %v584 = vld [vmem:[%s581 + $0x10] sm:$0xff]
    %v585 = vld [vmem:[%s581 + $0x18] sm:$0xff]
    %v587 = vsel %vm76, %v578, 0
    %589 = vmatprep.subr.mxu0 0.0
    %590 = vmatpush1.msra.mxu0 0.0
    %591 = vmatprep.subr.mxu0 0.0
    %592 = vmatpush1.msra.mxu0 0.0
    %593 = vmatprep.subr.mxu0 0.0
    %594 = vmatpush1.msra.mxu0 0.0
    %595 = vmatprep.subr.mxu0 0.0
    %596 = vmatpush1.msra.mxu0 0.0
    %597 = vmatprep.subr.mxu0 0.0
    %598 = vmatpush1.msra.mxu0 0.0
    %599 = vmatprep.subr.mxu0 0.0
    %600 = vmatpush1.msra.mxu0 0.0
    %601 = vmatprep.subr.mxu0 0.0
    %602 = vmatpush1.msra.mxu0 0.0
    %603 = vmatprep.subr.mxu0 0.0
    %604 = vmatpush1.msra.mxu0 0.0
    %605 = vmatprep.subr.mxu0 0.0
    %606 = vmatpush1.msra.mxu0 0.0
    %607 = vmatprep.subr.mxu0 0.0
    %608 = vmatpush1.msra.mxu0 0.0
    %609 = vmatprep.subr.mxu0 0.0
    %610 = vmatpush1.msra.mxu0 0.0
    %611 = vmatprep.subr.mxu0 0.0
    %612 = vmatpush1.msra.mxu0 0.0
    %613 = vmatprep.subr.mxu0 0.0
    %614 = vmatpush1.msra.mxu0 0.0
    %615 = vmatprep.subr.mxu0 0.0
    %616 = vmatpush1.msra.mxu0 0.0
    %617 = vmatprep.subr.mxu0 %v409
    %618 = vmatpush1.msra.mxu0 %v408
    %619 = vmatprep.subr.mxu0 %v405
    %620 = vmatpush1.msra.mxu0 %v404
    %621 = vmatprep.subr.mxu0 0.0
    %622 = vmatpush2.msra.mxu0 0.0
    %623 = vmatprep.subr.mxu0 0.0
    %624 = vmatpush2.msra.mxu0 0.0
    %625 = vmatprep.subr.mxu0 0.0
    %626 = vmatpush2.msra.mxu0 0.0
    %627 = vmatprep.subr.mxu0 0.0
    %628 = vmatpush2.msra.mxu0 0.0
    %629 = vmatprep.subr.mxu0 0.0
    %630 = vmatpush2.msra.mxu0 0.0
    %631 = vmatprep.subr.mxu0 0.0
    %632 = vmatpush2.msra.mxu0 0.0
    %633 = vmatprep.subr.mxu0 0.0
    %634 = vmatpush2.msra.mxu0 0.0
    %635 = vmatprep.subr.mxu0 0.0
    %636 = vmatpush2.msra.mxu0 0.0
    %637 = vmatprep.subr.mxu0 0.0
    %638 = vmatpush2.msra.mxu0 0.0
    %639 = vmatprep.subr.mxu0 0.0
    %640 = vmatpush2.msra.mxu0 0.0
    %641 = vmatprep.subr.mxu0 0.0
    %642 = vmatpush2.msra.mxu0 0.0
    %643 = vmatprep.subr.mxu0 0.0
    %644 = vmatpush2.msra.mxu0 0.0
    %645 = vmatprep.subr.mxu0 0.0
    %646 = vmatpush2.msra.mxu0 0.0
    %647 = vmatprep.subr.mxu0 0.0
    %648 = vmatpush2.msra.mxu0 0.0
    %649 = vmatprep.subr.mxu0 0.0
    %650 = vmatpush2.msra.mxu0 0.0
    %651 = vmatprep.subr.mxu0 0.0
    %652 = vmatpush2.msra.mxu0 0.0
    %653 = vmatprep.mubr.f32.mxu0 0.0
    %654 = vmatmul.mubr.f32.gmra.mxu0 %v587
    %v655 = vpop.f32.mrf.mxu0
    %v656 = vadd.f32 0.0, %v655
    %v657 = vpop.f32.mrf.mxu0
    %v658 = vadd.f32 0.0, %v657
    %659 = vdwg.mxu0
    %660 = vmatprep.subr.mxu0 0.0
    %661 = vmatpush1.msra.mxu0 0.0
    %662 = vmatprep.subr.mxu0 0.0
    %663 = vmatpush1.msra.mxu0 0.0
    %664 = vmatprep.subr.mxu0 0.0
    %665 = vmatpush1.msra.mxu0 0.0
    %666 = vmatprep.subr.mxu0 0.0
    %667 = vmatpush1.msra.mxu0 0.0
    %668 = vmatprep.subr.mxu0 0.0
    %669 = vmatpush1.msra.mxu0 0.0
    %670 = vmatprep.subr.mxu0 0.0
    %671 = vmatpush1.msra.mxu0 0.0
    %672 = vmatprep.subr.mxu0 0.0
    %673 = vmatpush1.msra.mxu0 0.0
    %674 = vmatprep.subr.mxu0 0.0
    %675 = vmatpush1.msra.mxu0 0.0
    %676 = vmatprep.subr.mxu0 0.0
    %677 = vmatpush1.msra.mxu0 0.0
    %678 = vmatprep.subr.mxu0 0.0
    %679 = vmatpush1.msra.mxu0 0.0
    %680 = vmatprep.subr.mxu0 0.0
    %681 = vmatpush1.msra.mxu0 0.0
    %682 = vmatprep.subr.mxu0 0.0
    %683 = vmatpush1.msra.mxu0 0.0
    %684 = vmatprep.subr.mxu0 0.0
    %685 = vmatpush1.msra.mxu0 0.0
    %686 = vmatprep.subr.mxu0 0.0
    %687 = vmatpush1.msra.mxu0 0.0
    %688 = vmatprep.subr.mxu0 %v411
    %689 = vmatpush1.msra.mxu0 %v410
    %690 = vmatprep.subr.mxu0 %v407
    %691 = vmatpush1.msra.mxu0 %v406
    %692 = vmatprep.subr.mxu0 0.0
    %693 = vmatpush2.msra.mxu0 0.0
    %694 = vmatprep.subr.mxu0 0.0
    %695 = vmatpush2.msra.mxu0 0.0
    %696 = vmatprep.subr.mxu0 0.0
    %697 = vmatpush2.msra.mxu0 0.0
    %698 = vmatprep.subr.mxu0 0.0
    %699 = vmatpush2.msra.mxu0 0.0
    %700 = vmatprep.subr.mxu0 0.0
    %701 = vmatpush2.msra.mxu0 0.0
    %702 = vmatprep.subr.mxu0 0.0
    %703 = vmatpush2.msra.mxu0 0.0
    %704 = vmatprep.subr.mxu0 0.0
    %705 = vmatpush2.msra.mxu0 0.0
    %706 = vmatprep.subr.mxu0 0.0
    %707 = vmatpush2.msra.mxu0 0.0
    %708 = vmatprep.subr.mxu0 0.0
    %709 = vmatpush2.msra.mxu0 0.0
    %710 = vmatprep.subr.mxu0 0.0
    %711 = vmatpush2.msra.mxu0 0.0
    %712 = vmatprep.subr.mxu0 0.0
    %713 = vmatpush2.msra.mxu0 0.0
    %714 = vmatprep.subr.mxu0 0.0
    %715 = vmatpush2.msra.mxu0 0.0
    %716 = vmatprep.subr.mxu0 0.0
    %717 = vmatpush2.msra.mxu0 0.0
    %718 = vmatprep.subr.mxu0 0.0
    %719 = vmatpush2.msra.mxu0 0.0
    %720 = vmatprep.subr.mxu0 0.0
    %721 = vmatpush2.msra.mxu0 0.0
    %722 = vmatprep.subr.mxu0 0.0
    %723 = vmatpush2.msra.mxu0 0.0
    %724 = vmatprep.mubr.f32.mxu0 0.0
    %725 = vmatmul.mubr.f32.gmra.mxu0 %v587
    %v726 = vpop.f32.mrf.mxu0
    %v727 = vadd.f32 0.0, %v726
    %v728 = vpop.f32.mrf.mxu0
    %v729 = vadd.f32 0.0, %v728
    %730 = vdwg.mxu0
    %v731 = vadd.f32 %v582, %v656
    %v732 = vadd.f32 %v583, %v658
    %v733 = vadd.f32 %v584, %v727
    %v734 = vadd.f32 %v585, %v729
    %v735 = vmul.f32 %v731, 0.5
    %v736 = vtanh.pop %v735
    %v737 = vmul.f32 %v736, 0.5
    %v738 = vadd.f32 %v737, 0.5
    %v739 = vmul.f32 %v732, 0.5
    %v740 = vtanh.pop %v739
    %v741 = vmul.f32 %v740, 0.5
    %v742 = vadd.f32 %v741, 0.5
    %v743 = vtanh.pop %v733
    %v744 = vmul.f32 %v734, 0.5
    %v745 = vtanh.pop %v744
    %v746 = vmul.f32 %v745, 0.5
    %v747 = vadd.f32 %v746, 0.5
    %v748 = vmul.f32 %v742, %v576
    %v749 = vmul.f32 %v738, %v743
    %v750 = vadd.f32 %v748, %v749
    %v751 = vtanh.pop %v750
    %v752 = vmul.f32 %v747, %v751
    %s753 = smul.u32 2, 4
    %s754 = smul.addr %s753, 8
    %s755 = scalar_lea.vmem [#allocation2], %s754
    %v756 = vld [vmem:[%s755] sm:$0xff]
    %v757 = vld [vmem:[%s755 + $0x8] sm:$0xff]
    %v758 = vld [vmem:[%s755 + $0x10] sm:$0xff]
    %v759 = vld [vmem:[%s755 + $0x18] sm:$0xff]
    %v761 = vsel %vm76, %v752, 0
    %763 = vmatprep.subr.mxu0 0.0
    %764 = vmatpush1.msra.mxu0 0.0
    %765 = vmatprep.subr.mxu0 0.0
    %766 = vmatpush1.msra.mxu0 0.0
    %767 = vmatprep.subr.mxu0 0.0
    %768 = vmatpush1.msra.mxu0 0.0
    %769 = vmatprep.subr.mxu0 0.0
    %770 = vmatpush1.msra.mxu0 0.0
    %771 = vmatprep.subr.mxu0 0.0
    %772 = vmatpush1.msra.mxu0 0.0
    %773 = vmatprep.subr.mxu0 0.0
    %774 = vmatpush1.msra.mxu0 0.0
    %775 = vmatprep.subr.mxu0 0.0
    %776 = vmatpush1.msra.mxu0 0.0
    %777 = vmatprep.subr.mxu0 0.0
    %778 = vmatpush1.msra.mxu0 0.0
    %779 = vmatprep.subr.mxu0 0.0
    %780 = vmatpush1.msra.mxu0 0.0
    %781 = vmatprep.subr.mxu0 0.0
    %782 = vmatpush1.msra.mxu0 0.0
    %783 = vmatprep.subr.mxu0 0.0
    %784 = vmatpush1.msra.mxu0 0.0
    %785 = vmatprep.subr.mxu0 0.0
    %786 = vmatpush1.msra.mxu0 0.0
    %787 = vmatprep.subr.mxu0 0.0
    %788 = vmatpush1.msra.mxu0 0.0
    %789 = vmatprep.subr.mxu0 0.0
    %790 = vmatpush1.msra.mxu0 0.0
    %791 = vmatprep.subr.mxu0 %v409
    %792 = vmatpush1.msra.mxu0 %v408
    %793 = vmatprep.subr.mxu0 %v405
    %794 = vmatpush1.msra.mxu0 %v404
    %795 = vmatprep.subr.mxu0 0.0
    %796 = vmatpush2.msra.mxu0 0.0
    %797 = vmatprep.subr.mxu0 0.0
    %798 = vmatpush2.msra.mxu0 0.0
    %799 = vmatprep.subr.mxu0 0.0
    %800 = vmatpush2.msra.mxu0 0.0
    %801 = vmatprep.subr.mxu0 0.0
    %802 = vmatpush2.msra.mxu0 0.0
    %803 = vmatprep.subr.mxu0 0.0
    %804 = vmatpush2.msra.mxu0 0.0
    %805 = vmatprep.subr.mxu0 0.0
    %806 = vmatpush2.msra.mxu0 0.0
    %807 = vmatprep.subr.mxu0 0.0
    %808 = vmatpush2.msra.mxu0 0.0
    %809 = vmatprep.subr.mxu0 0.0
    %810 = vmatpush2.msra.mxu0 0.0
    %811 = vmatprep.subr.mxu0 0.0
    %812 = vmatpush2.msra.mxu0 0.0
    %813 = vmatprep.subr.mxu0 0.0
    %814 = vmatpush2.msra.mxu0 0.0
    %815 = vmatprep.subr.mxu0 0.0
    %816 = vmatpush2.msra.mxu0 0.0
    %817 = vmatprep.subr.mxu0 0.0
    %818 = vmatpush2.msra.mxu0 0.0
    %819 = vmatprep.subr.mxu0 0.0
    %820 = vmatpush2.msra.mxu0 0.0
    %821 = vmatprep.subr.mxu0 0.0
    %822 = vmatpush2.msra.mxu0 0.0
    %823 = vmatprep.subr.mxu0 0.0
    %824 = vmatpush2.msra.mxu0 0.0
    %825 = vmatprep.subr.mxu0 0.0
    %826 = vmatpush2.msra.mxu0 0.0
    %827 = vmatprep.mubr.f32.mxu0 0.0
    %828 = vmatmul.mubr.f32.gmra.mxu0 %v761
    %v829 = vpop.f32.mrf.mxu0
    %v830 = vadd.f32 0.0, %v829
    %v831 = vpop.f32.mrf.mxu0
    %v832 = vadd.f32 0.0, %v831
    %833 = vdwg.mxu0
    %834 = vmatprep.subr.mxu0 0.0
    %835 = vmatpush1.msra.mxu0 0.0
    %836 = vmatprep.subr.mxu0 0.0
    %837 = vmatpush1.msra.mxu0 0.0
    %838 = vmatprep.subr.mxu0 0.0
    %839 = vmatpush1.msra.mxu0 0.0
    %840 = vmatprep.subr.mxu0 0.0
    %841 = vmatpush1.msra.mxu0 0.0
    %842 = vmatprep.subr.mxu0 0.0
    %843 = vmatpush1.msra.mxu0 0.0
    %844 = vmatprep.subr.mxu0 0.0
    %845 = vmatpush1.msra.mxu0 0.0
    %846 = vmatprep.subr.mxu0 0.0
    %847 = vmatpush1.msra.mxu0 0.0
    %848 = vmatprep.subr.mxu0 0.0
    %849 = vmatpush1.msra.mxu0 0.0
    %850 = vmatprep.subr.mxu0 0.0
    %851 = vmatpush1.msra.mxu0 0.0
    %852 = vmatprep.subr.mxu0 0.0
    %853 = vmatpush1.msra.mxu0 0.0
    %854 = vmatprep.subr.mxu0 0.0
    %855 = vmatpush1.msra.mxu0 0.0
    %856 = vmatprep.subr.mxu0 0.0
    %857 = vmatpush1.msra.mxu0 0.0
    %858 = vmatprep.subr.mxu0 0.0
    %859 = vmatpush1.msra.mxu0 0.0
    %860 = vmatprep.subr.mxu0 0.0
    %861 = vmatpush1.msra.mxu0 0.0
    %862 = vmatprep.subr.mxu0 %v411
    %863 = vmatpush1.msra.mxu0 %v410
    %864 = vmatprep.subr.mxu0 %v407
    %865 = vmatpush1.msra.mxu0 %v406
    %866 = vmatprep.subr.mxu0 0.0
    %867 = vmatpush2.msra.mxu0 0.0
    %868 = vmatprep.subr.mxu0 0.0
    %869 = vmatpush2.msra.mxu0 0.0
    %870 = vmatprep.subr.mxu0 0.0
    %871 = vmatpush2.msra.mxu0 0.0
    %872 = vmatprep.subr.mxu0 0.0
    %873 = vmatpush2.msra.mxu0 0.0
    %874 = vmatprep.subr.mxu0 0.0
    %875 = vmatpush2.msra.mxu0 0.0
    %876 = vmatprep.subr.mxu0 0.0
    %877 = vmatpush2.msra.mxu0 0.0
    %878 = vmatprep.subr.mxu0 0.0
    %879 = vmatpush2.msra.mxu0 0.0
    %880 = vmatprep.subr.mxu0 0.0
    %881 = vmatpush2.msra.mxu0 0.0
    %882 = vmatprep.subr.mxu0 0.0
    %883 = vmatpush2.msra.mxu0 0.0
    %884 = vmatprep.subr.mxu0 0.0
    %885 = vmatpush2.msra.mxu0 0.0
    %886 = vmatprep.subr.mxu0 0.0
    %887 = vmatpush2.msra.mxu0 0.0
    %888 = vmatprep.subr.mxu0 0.0
    %889 = vmatpush2.msra.mxu0 0.0
    %890 = vmatprep.subr.mxu0 0.0
    %891 = vmatpush2.msra.mxu0 0.0
    %892 = vmatprep.subr.mxu0 0.0
    %893 = vmatpush2.msra.mxu0 0.0
    %894 = vmatprep.subr.mxu0 0.0
    %895 = vmatpush2.msra.mxu0 0.0
    %896 = vmatprep.subr.mxu0 0.0
    %897 = vmatpush2.msra.mxu0 0.0
    %898 = vmatprep.mubr.f32.mxu0 0.0
    %899 = vmatmul.mubr.f32.gmra.mxu0 %v761
    %v900 = vpop.f32.mrf.mxu0
    %v901 = vadd.f32 0.0, %v900
    %v902 = vpop.f32.mrf.mxu0
    %v903 = vadd.f32 0.0, %v902
    %904 = vdwg.mxu0
    %v905 = vadd.f32 %v756, %v830
    %v906 = vadd.f32 %v757, %v832
    %v907 = vadd.f32 %v758, %v901
    %v908 = vadd.f32 %v759, %v903
    %v909 = vmul.f32 %v905, 0.5
    %v910 = vtanh.pop %v909
    %v911 = vmul.f32 %v910, 0.5
    %v912 = vadd.f32 %v911, 0.5
    %v913 = vmul.f32 %v906, 0.5
    %v914 = vtanh.pop %v913
    %v915 = vmul.f32 %v914, 0.5
    %v916 = vadd.f32 %v915, 0.5
    %v917 = vtanh.pop %v907
    %v918 = vmul.f32 %v908, 0.5
    %v919 = vtanh.pop %v918
    %v920 = vmul.f32 %v919, 0.5
    %v921 = vadd.f32 %v920, 0.5
    %v922 = vmul.f32 %v916, %v750
    %v923 = vmul.f32 %v912, %v917
    %v924 = vadd.f32 %v922, %v923
    %v925 = vtanh.pop %v924
    %v926 = vmul.f32 %v921, %v925
    %s927 = smul.u32 3, 4
    %s928 = smul.addr %s927, 8
    %s929 = scalar_lea.vmem [#allocation2], %s928
    %v930 = vld [vmem:[%s929] sm:$0xff]
    %v931 = vld [vmem:[%s929 + $0x8] sm:$0xff]
    %v932 = vld [vmem:[%s929 + $0x10] sm:$0xff]
    %v933 = vld [vmem:[%s929 + $0x18] sm:$0xff]
    %v935 = vsel %vm76, %v926, 0
    %937 = vmatprep.subr.mxu0 0.0
    %938 = vmatpush1.msra.mxu0 0.0
    %939 = vmatprep.subr.mxu0 0.0
    %940 = vmatpush1.msra.mxu0 0.0
    %941 = vmatprep.subr.mxu0 0.0
    %942 = vmatpush1.msra.mxu0 0.0
    %943 = vmatprep.subr.mxu0 0.0
    %944 = vmatpush1.msra.mxu0 0.0
    %945 = vmatprep.subr.mxu0 0.0
    %946 = vmatpush1.msra.mxu0 0.0
    %947 = vmatprep.subr.mxu0 0.0
    %948 = vmatpush1.msra.mxu0 0.0
    %949 = vmatprep.subr.mxu0 0.0
    %950 = vmatpush1.msra.mxu0 0.0
    %951 = vmatprep.subr.mxu0 0.0
    %952 = vmatpush1.msra.mxu0 0.0
    %953 = vmatprep.subr.mxu0 0.0
    %954 = vmatpush1.msra.mxu0 0.0
    %955 = vmatprep.subr.mxu0 0.0
    %956 = vmatpush1.msra.mxu0 0.0
    %957 = vmatprep.subr.mxu0 0.0
    %958 = vmatpush1.msra.mxu0 0.0
    %959 = vmatprep.subr.mxu0 0.0
    %960 = vmatpush1.msra.mxu0 0.0
    %961 = vmatprep.subr.mxu0 0.0
    %962 = vmatpush1.msra.mxu0 0.0
    %963 = vmatprep.subr.mxu0 0.0
    %964 = vmatpush1.msra.mxu0 0.0
    %965 = vmatprep.subr.mxu0 %v409
    %966 = vmatpush1.msra.mxu0 %v408
    %967 = vmatprep.subr.mxu0 %v405
    %968 = vmatpush1.msra.mxu0 %v404
    %969 = vmatprep.subr.mxu0 0.0
    %970 = vmatpush2.msra.mxu0 0.0
    %971 = vmatprep.subr.mxu0 0.0
    %972 = vmatpush2.msra.mxu0 0.0
    %973 = vmatprep.subr.mxu0 0.0
    %974 = vmatpush2.msra.mxu0 0.0
    %975 = vmatprep.subr.mxu0 0.0
    %976 = vmatpush2.msra.mxu0 0.0
    %977 = vmatprep.subr.mxu0 0.0
    %978 = vmatpush2.msra.mxu0 0.0
    %979 = vmatprep.subr.mxu0 0.0
    %980 = vmatpush2.msra.mxu0 0.0
    %981 = vmatprep.subr.mxu0 0.0
    %982 = vmatpush2.msra.mxu0 0.0
    %983 = vmatprep.subr.mxu0 0.0
    %984 = vmatpush2.msra.mxu0 0.0
    %985 = vmatprep.subr.mxu0 0.0
    %986 = vmatpush2.msra.mxu0 0.0
    %987 = vmatprep.subr.mxu0 0.0
    %988 = vmatpush2.msra.mxu0 0.0
    %989 = vmatprep.subr.mxu0 0.0
    %990 = vmatpush2.msra.mxu0 0.0
    %991 = vmatprep.subr.mxu0 0.0
    %992 = vmatpush2.msra.mxu0 0.0
    %993 = vmatprep.subr.mxu0 0.0
    %994 = vmatpush2.msra.mxu0 0.0
    %995 = vmatprep.subr.mxu0 0.0
    %996 = vmatpush2.msra.mxu0 0.0
    %997 = vmatprep.subr.mxu0 0.0
    %998 = vmatpush2.msra.mxu0 0.0
    %999 = vmatprep.subr.mxu0 0.0
    %1000 = vmatpush2.msra.mxu0 0.0
    %1001 = vmatprep.mubr.f32.mxu0 0.0
    %1002 = vmatmul.mubr.f32.gmra.mxu0 %v935
    %v1003 = vpop.f32.mrf.mxu0
    %v1004 = vadd.f32 0.0, %v1003
    %v1005 = vpop.f32.mrf.mxu0
    %v1006 = vadd.f32 0.0, %v1005
    %1007 = vdwg.mxu0
    %1008 = vmatprep.subr.mxu0 0.0
    %1009 = vmatpush1.msra.mxu0 0.0
    %1010 = vmatprep.subr.mxu0 0.0
    %1011 = vmatpush1.msra.mxu0 0.0
    %1012 = vmatprep.subr.mxu0 0.0
    %1013 = vmatpush1.msra.mxu0 0.0
    %1014 = vmatprep.subr.mxu0 0.0
    %1015 = vmatpush1.msra.mxu0 0.0
    %1016 = vmatprep.subr.mxu0 0.0
    %1017 = vmatpush1.msra.mxu0 0.0
    %1018 = vmatprep.subr.mxu0 0.0
    %1019 = vmatpush1.msra.mxu0 0.0
    %1020 = vmatprep.subr.mxu0 0.0
    %1021 = vmatpush1.msra.mxu0 0.0
    %1022 = vmatprep.subr.mxu0 0.0
    %1023 = vmatpush1.msra.mxu0 0.0
    %1024 = vmatprep.subr.mxu0 0.0
    %1025 = vmatpush1.msra.mxu0 0.0
    %1026 = vmatprep.subr.mxu0 0.0
    %1027 = vmatpush1.msra.mxu0 0.0
    %1028 = vmatprep.subr.mxu0 0.0
    %1029 = vmatpush1.msra.mxu0 0.0
    %1030 = vmatprep.subr.mxu0 0.0
    %1031 = vmatpush1.msra.mxu0 0.0
    %1032 = vmatprep.subr.mxu0 0.0
    %1033 = vmatpush1.msra.mxu0 0.0
    %1034 = vmatprep.subr.mxu0 0.0
    %1035 = vmatpush1.msra.mxu0 0.0
    %1036 = vmatprep.subr.mxu0 %v411
    %1037 = vmatpush1.msra.mxu0 %v410
    %1038 = vmatprep.subr.mxu0 %v407
    %1039 = vmatpush1.msra.mxu0 %v406
    %1040 = vmatprep.subr.mxu0 0.0
    %1041 = vmatpush2.msra.mxu0 0.0
    %1042 = vmatprep.subr.mxu0 0.0
    %1043 = vmatpush2.msra.mxu0 0.0
    %1044 = vmatprep.subr.mxu0 0.0
    %1045 = vmatpush2.msra.mxu0 0.0
    %1046 = vmatprep.subr.mxu0 0.0
    %1047 = vmatpush2.msra.mxu0 0.0
    %1048 = vmatprep.subr.mxu0 0.0
    %1049 = vmatpush2.msra.mxu0 0.0
    %1050 = vmatprep.subr.mxu0 0.0
    %1051 = vmatpush2.msra.mxu0 0.0
    %1052 = vmatprep.subr.mxu0 0.0
    %1053 = vmatpush2.msra.mxu0 0.0
    %1054 = vmatprep.subr.mxu0 0.0
    %1055 = vmatpush2.msra.mxu0 0.0
    %1056 = vmatprep.subr.mxu0 0.0
    %1057 = vmatpush2.msra.mxu0 0.0
    %1058 = vmatprep.subr.mxu0 0.0
    %1059 = vmatpush2.msra.mxu0 0.0
    %1060 = vmatprep.subr.mxu0 0.0
    %1061 = vmatpush2.msra.mxu0 0.0
    %1062 = vmatprep.subr.mxu0 0.0
    %1063 = vmatpush2.msra.mxu0 0.0
    %1064 = vmatprep.subr.mxu0 0.0
    %1065 = vmatpush2.msra.mxu0 0.0
    %1066 = vmatprep.subr.mxu0 0.0
    %1067 = vmatpush2.msra.mxu0 0.0
    %1068 = vmatprep.subr.mxu0 0.0
    %1069 = vmatpush2.msra.mxu0 0.0
    %1070 = vmatprep.subr.mxu0 0.0
    %1071 = vmatpush2.msra.mxu0 0.0
    %1072 = vmatprep.mubr.f32.mxu0 0.0
    %1073 = vmatmul.mubr.f32.gmra.mxu0 %v935
    %v1074 = vpop.f32.mrf.mxu0
    %v1075 = vadd.f32 0.0, %v1074
    %v1076 = vpop.f32.mrf.mxu0
    %v1077 = vadd.f32 0.0, %v1076
    %1078 = vdwg.mxu0
    %v1079 = vadd.f32 %v930, %v1004
    %v1080 = vadd.f32 %v931, %v1006
    %v1081 = vadd.f32 %v932, %v1075
    %v1082 = vadd.f32 %v933, %v1077
    %v1083 = vmul.f32 %v1079, 0.5
    %v1084 = vtanh.pop %v1083
    %v1085 = vmul.f32 %v1084, 0.5
    %v1086 = vadd.f32 %v1085, 0.5
    %v1087 = vmul.f32 %v1080, 0.5
    %v1088 = vtanh.pop %v1087
    %v1089 = vmul.f32 %v1088, 0.5
    %v1090 = vadd.f32 %v1089, 0.5
    %v1091 = vtanh.pop %v1081
    %v1092 = vmul.f32 %v1082, 0.5
    %v1093 = vtanh.pop %v1092
    %v1094 = vmul.f32 %v1093, 0.5
    %v1095 = vadd.f32 %v1094, 0.5
    %v1096 = vmul.f32 %v1090, %v924
    %v1097 = vmul.f32 %v1086, %v1091
    %v1098 = vadd.f32 %v1096, %v1097
    %v1099 = vtanh.pop %v1098
    %v1100 = vmul.f32 %v1095, %v1099
    %s1101 = smul.u32 4, 4
    %s1102 = smul.addr %s1101, 8
    %s1103 = scalar_lea.vmem [#allocation2], %s1102
    %v1104 = vld [vmem:[%s1103] sm:$0xff]
    %v1105 = vld [vmem:[%s1103 + $0x8] sm:$0xff]
    %v1106 = vld [vmem:[%s1103 + $0x10] sm:$0xff]
    %v1107 = vld [vmem:[%s1103 + $0x18] sm:$0xff]
    %v1109 = vsel %vm76, %v1100, 0
    %1111 = vmatprep.subr.mxu0 0.0
    %1112 = vmatpush1.msra.mxu0 0.0
    %1113 = vmatprep.subr.mxu0 0.0
    %1114 = vmatpush1.msra.mxu0 0.0
    %1115 = vmatprep.subr.mxu0 0.0
    %1116 = vmatpush1.msra.mxu0 0.0
    %1117 = vmatprep.subr.mxu0 0.0
    %1118 = vmatpush1.msra.mxu0 0.0
    %1119 = vmatprep.subr.mxu0 0.0
    %1120 = vmatpush1.msra.mxu0 0.0
    %1121 = vmatprep.subr.mxu0 0.0
    %1122 = vmatpush1.msra.mxu0 0.0
    %1123 = vmatprep.subr.mxu0 0.0
    %1124 = vmatpush1.msra.mxu0 0.0
    %1125 = vmatprep.subr.mxu0 0.0
    %1126 = vmatpush1.msra.mxu0 0.0
    %1127 = vmatprep.subr.mxu0 0.0
    %1128 = vmatpush1.msra.mxu0 0.0
    %1129 = vmatprep.subr.mxu0 0.0
    %1130 = vmatpush1.msra.mxu0 0.0
    %1131 = vmatprep.subr.mxu0 0.0
    %1132 = vmatpush1.msra.mxu0 0.0
    %1133 = vmatprep.subr.mxu0 0.0
    %1134 = vmatpush1.msra.mxu0 0.0
    %1135 = vmatprep.subr.mxu0 0.0
    %1136 = vmatpush1.msra.mxu0 0.0
    %1137 = vmatprep.subr.mxu0 0.0
    %1138 = vmatpush1.msra.mxu0 0.0
    %1139 = vmatprep.subr.mxu0 %v409
    %1140 = vmatpush1.msra.mxu0 %v408
    %1141 = vmatprep.subr.mxu0 %v405
    %1142 = vmatpush1.msra.mxu0 %v404
    %1143 = vmatprep.subr.mxu0 0.0
    %1144 = vmatpush2.msra.mxu0 0.0
    %1145 = vmatprep.subr.mxu0 0.0
    %1146 = vmatpush2.msra.mxu0 0.0
    %1147 = vmatprep.subr.mxu0 0.0
    %1148 = vmatpush2.msra.mxu0 0.0
    %1149 = vmatprep.subr.mxu0 0.0
    %1150 = vmatpush2.msra.mxu0 0.0
    %1151 = vmatprep.subr.mxu0 0.0
    %1152 = vmatpush2.msra.mxu0 0.0
    %1153 = vmatprep.subr.mxu0 0.0
    %1154 = vmatpush2.msra.mxu0 0.0
    %1155 = vmatprep.subr.mxu0 0.0
    %1156 = vmatpush2.msra.mxu0 0.0
    %1157 = vmatprep.subr.mxu0 0.0
    %1158 = vmatpush2.msra.mxu0 0.0
    %1159 = vmatprep.subr.mxu0 0.0
    %1160 = vmatpush2.msra.mxu0 0.0
    %1161 = vmatprep.subr.mxu0 0.0
    %1162 = vmatpush2.msra.mxu0 0.0
    %1163 = vmatprep.subr.mxu0 0.0
    %1164 = vmatpush2.msra.mxu0 0.0
    %1165 = vmatprep.subr.mxu0 0.0
    %1166 = vmatpush2.msra.mxu0 0.0
    %1167 = vmatprep.subr.mxu0 0.0
    %1168 = vmatpush2.msra.mxu0 0.0
    %1169 = vmatprep.subr.mxu0 0.0
    %1170 = vmatpush2.msra.mxu0 0.0
    %1171 = vmatprep.subr.mxu0 0.0
    %1172 = vmatpush2.msra.mxu0 0.0
    %1173 = vmatprep.subr.mxu0 0.0
    %1174 = vmatpush2.msra.mxu0 0.0
    %1175 = vmatprep.mubr.f32.mxu0 0.0
    %1176 = vmatmul.mubr.f32.gmra.mxu0 %v1109
    %v1177 = vpop.f32.mrf.mxu0
    %v1178 = vadd.f32 0.0, %v1177
    %v1179 = vpop.f32.mrf.mxu0
    %v1180 = vadd.f32 0.0, %v1179
    %1181 = vdwg.mxu0
    %1182 = vmatprep.subr.mxu0 0.0
    %1183 = vmatpush1.msra.mxu0 0.0
    %1184 = vmatprep.subr.mxu0 0.0
    %1185 = vmatpush1.msra.mxu0 0.0
    %1186 = vmatprep.subr.mxu0 0.0
    %1187 = vmatpush1.msra.mxu0 0.0
    %1188 = vmatprep.subr.mxu0 0.0
    %1189 = vmatpush1.msra.mxu0 0.0
    %1190 = vmatprep.subr.mxu0 0.0
    %1191 = vmatpush1.msra.mxu0 0.0
    %1192 = vmatprep.subr.mxu0 0.0
    %1193 = vmatpush1.msra.mxu0 0.0
    %1194 = vmatprep.subr.mxu0 0.0
    %1195 = vmatpush1.msra.mxu0 0.0
    %1196 = vmatprep.subr.mxu0 0.0
    %1197 = vmatpush1.msra.mxu0 0.0
    %1198 = vmatprep.subr.mxu0 0.0
    %1199 = vmatpush1.msra.mxu0 0.0
    %1200 = vmatprep.subr.mxu0 0.0
    %1201 = vmatpush1.msra.mxu0 0.0
    %1202 = vmatprep.subr.mxu0 0.0
    %1203 = vmatpush1.msra.mxu0 0.0
    %1204 = vmatprep.subr.mxu0 0.0
    %1205 = vmatpush1.msra.mxu0 0.0
    %1206 = vmatprep.subr.mxu0 0.0
    %1207 = vmatpush1.msra.mxu0 0.0
    %1208 = vmatprep.subr.mxu0 0.0
    %1209 = vmatpush1.msra.mxu0 0.0
    %1210 = vmatprep.subr.mxu0 %v411
    %1211 = vmatpush1.msra.mxu0 %v410
    %1212 = vmatprep.subr.mxu0 %v407
    %1213 = vmatpush1.msra.mxu0 %v406
    %1214 = vmatprep.subr.mxu0 0.0
    %1215 = vmatpush2.msra.mxu0 0.0
    %1216 = vmatprep.subr.mxu0 0.0
    %1217 = vmatpush2.msra.mxu0 0.0
    %1218 = vmatprep.subr.mxu0 0.0
    %1219 = vmatpush2.msra.mxu0 0.0
    %1220 = vmatprep.subr.mxu0 0.0
    %1221 = vmatpush2.msra.mxu0 0.0
    %1222 = vmatprep.subr.mxu0 0.0
    %1223 = vmatpush2.msra.mxu0 0.0
    %1224 = vmatprep.subr.mxu0 0.0
    %1225 = vmatpush2.msra.mxu0 0.0
    %1226 = vmatprep.subr.mxu0 0.0
    %1227 = vmatpush2.msra.mxu0 0.0
    %1228 = vmatprep.subr.mxu0 0.0
    %1229 = vmatpush2.msra.mxu0 0.0
    %1230 = vmatprep.subr.mxu0 0.0
    %1231 = vmatpush2.msra.mxu0 0.0
    %1232 = vmatprep.subr.mxu0 0.0
    %1233 = vmatpush2.msra.mxu0 0.0
    %1234 = vmatprep.subr.mxu0 0.0
    %1235 = vmatpush2.msra.mxu0 0.0
    %1236 = vmatprep.subr.mxu0 0.0
    %1237 = vmatpush2.msra.mxu0 0.0
    %1238 = vmatprep.subr.mxu0 0.0
    %1239 = vmatpush2.msra.mxu0 0.0
    %1240 = vmatprep.subr.mxu0 0.0
    %1241 = vmatpush2.msra.mxu0 0.0
    %1242 = vmatprep.subr.mxu0 0.0
    %1243 = vmatpush2.msra.mxu0 0.0
    %1244 = vmatprep.subr.mxu0 0.0
    %1245 = vmatpush2.msra.mxu0 0.0
    %1246 = vmatprep.mubr.f32.mxu0 0.0
    %1247 = vmatmul.mubr.f32.gmra.mxu0 %v1109
    %v1248 = vpop.f32.mrf.mxu0
    %v1249 = vadd.f32 0.0, %v1248
    %v1250 = vpop.f32.mrf.mxu0
    %v1251 = vadd.f32 0.0, %v1250
    %1252 = vdwg.mxu0
    %v1253 = vadd.f32 %v1104, %v1178
    %v1254 = vadd.f32 %v1105, %v1180
    %v1255 = vadd.f32 %v1106, %v1249
    %v1256 = vadd.f32 %v1107, %v1251
    %v1257 = vmul.f32 %v1253, 0.5
    %v1258 = vtanh.pop %v1257
    %v1259 = vmul.f32 %v1258, 0.5
    %v1260 = vadd.f32 %v1259, 0.5
    %v1261 = vmul.f32 %v1254, 0.5
    %v1262 = vtanh.pop %v1261
    %v1263 = vmul.f32 %v1262, 0.5
    %v1264 = vadd.f32 %v1263, 0.5
    %v1265 = vtanh.pop %v1255
    %v1266 = vmul.f32 %v1256, 0.5
    %v1267 = vtanh.pop %v1266
    %v1268 = vmul.f32 %v1267, 0.5
    %v1269 = vadd.f32 %v1268, 0.5
    %v1270 = vmul.f32 %v1264, %v1098
    %v1271 = vmul.f32 %v1260, %v1265
    %v1272 = vadd.f32 %v1270, %v1271
    %v1273 = vtanh.pop %v1272
    %v1274 = vmul.f32 %v1269, %v1273
    %s1275 = smul.u32 5, 4
    %s1276 = smul.addr %s1275, 8
    %s1277 = scalar_lea.vmem [#allocation2], %s1276
    %v1278 = vld [vmem:[%s1277] sm:$0xff]
    %v1279 = vld [vmem:[%s1277 + $0x8] sm:$0xff]
    %v1280 = vld [vmem:[%s1277 + $0x10] sm:$0xff]
    %v1281 = vld [vmem:[%s1277 + $0x18] sm:$0xff]
    %v1283 = vsel %vm76, %v1274, 0
    %1285 = vmatprep.subr.mxu0 0.0
    %1286 = vmatpush1.msra.mxu0 0.0
    %1287 = vmatprep.subr.mxu0 0.0
    %1288 = vmatpush1.msra.mxu0 0.0
    %1289 = vmatprep.subr.mxu0 0.0
    %1290 = vmatpush1.msra.mxu0 0.0
    %1291 = vmatprep.subr.mxu0 0.0
    %1292 = vmatpush1.msra.mxu0 0.0
    %1293 = vmatprep.subr.mxu0 0.0
    %1294 = vmatpush1.msra.mxu0 0.0
    %1295 = vmatprep.subr.mxu0 0.0
    %1296 = vmatpush1.msra.mxu0 0.0
    %1297 = vmatprep.subr.mxu0 0.0
    %1298 = vmatpush1.msra.mxu0 0.0
    %1299 = vmatprep.subr.mxu0 0.0
    %1300 = vmatpush1.msra.mxu0 0.0
    %1301 = vmatprep.subr.mxu0 0.0
    %1302 = vmatpush1.msra.mxu0 0.0
    %1303 = vmatprep.subr.mxu0 0.0
    %1304 = vmatpush1.msra.mxu0 0.0
    %1305 = vmatprep.subr.mxu0 0.0
    %1306 = vmatpush1.msra.mxu0 0.0
    %1307 = vmatprep.subr.mxu0 0.0
    %1308 = vmatpush1.msra.mxu0 0.0
    %1309 = vmatprep.subr.mxu0 0.0
    %1310 = vmatpush1.msra.mxu0 0.0
    %1311 = vmatprep.subr.mxu0 0.0
    %1312 = vmatpush1.msra.mxu0 0.0
    %1313 = vmatprep.subr.mxu0 %v409
    %1314 = vmatpush1.msra.mxu0 %v408
    %1315 = vmatprep.subr.mxu0 %v405
    %1316 = vmatpush1.msra.mxu0 %v404
    %1317 = vmatprep.subr.mxu0 0.0
    %1318 = vmatpush2.msra.mxu0 0.0
    %1319 = vmatprep.subr.mxu0 0.0
    %1320 = vmatpush2.msra.mxu0 0.0
    %1321 = vmatprep.subr.mxu0 0.0
    %1322 = vmatpush2.msra.mxu0 0.0
    %1323 = vmatprep.subr.mxu0 0.0
    %1324 = vmatpush2.msra.mxu0 0.0
    %1325 = vmatprep.subr.mxu0 0.0
    %1326 = vmatpush2.msra.mxu0 0.0
    %1327 = vmatprep.subr.mxu0 0.0
    %1328 = vmatpush2.msra.mxu0 0.0
    %1329 = vmatprep.subr.mxu0 0.0
    %1330 = vmatpush2.msra.mxu0 0.0
    %1331 = vmatprep.subr.mxu0 0.0
    %1332 = vmatpush2.msra.mxu0 0.0
    %1333 = vmatprep.subr.mxu0 0.0
    %1334 = vmatpush2.msra.mxu0 0.0
    %1335 = vmatprep.subr.mxu0 0.0
    %1336 = vmatpush2.msra.mxu0 0.0
    %1337 = vmatprep.subr.mxu0 0.0
    %1338 = vmatpush2.msra.mxu0 0.0
    %1339 = vmatprep.subr.mxu0 0.0
    %1340 = vmatpush2.msra.mxu0 0.0
    %1341 = vmatprep.subr.mxu0 0.0
    %1342 = vmatpush2.msra.mxu0 0.0
    %1343 = vmatprep.subr.mxu0 0.0
    %1344 = vmatpush2.msra.mxu0 0.0
    %1345 = vmatprep.subr.mxu0 0.0
    %1346 = vmatpush2.msra.mxu0 0.0
    %1347 = vmatprep.subr.mxu0 0.0
    %1348 = vmatpush2.msra.mxu0 0.0
    %1349 = vmatprep.mubr.f32.mxu0 0.0
    %1350 = vmatmul.mubr.f32.gmra.mxu0 %v1283
    %v1351 = vpop.f32.mrf.mxu0
    %v1352 = vadd.f32 0.0, %v1351
    %v1353 = vpop.f32.mrf.mxu0
    %v1354 = vadd.f32 0.0, %v1353
    %1355 = vdwg.mxu0
    %1356 = vmatprep.subr.mxu0 0.0
    %1357 = vmatpush1.msra.mxu0 0.0
    %1358 = vmatprep.subr.mxu0 0.0
    %1359 = vmatpush1.msra.mxu0 0.0
    %1360 = vmatprep.subr.mxu0 0.0
    %1361 = vmatpush1.msra.mxu0 0.0
    %1362 = vmatprep.subr.mxu0 0.0
    %1363 = vmatpush1.msra.mxu0 0.0
    %1364 = vmatprep.subr.mxu0 0.0
    %1365 = vmatpush1.msra.mxu0 0.0
    %1366 = vmatprep.subr.mxu0 0.0
    %1367 = vmatpush1.msra.mxu0 0.0
    %1368 = vmatprep.subr.mxu0 0.0
    %1369 = vmatpush1.msra.mxu0 0.0
    %1370 = vmatprep.subr.mxu0 0.0
    %1371 = vmatpush1.msra.mxu0 0.0
    %1372 = vmatprep.subr.mxu0 0.0
    %1373 = vmatpush1.msra.mxu0 0.0
    %1374 = vmatprep.subr.mxu0 0.0
    %1375 = vmatpush1.msra.mxu0 0.0
    %1376 = vmatprep.subr.mxu0 0.0
    %1377 = vmatpush1.msra.mxu0 0.0
    %1378 = vmatprep.subr.mxu0 0.0
    %1379 = vmatpush1.msra.mxu0 0.0
    %1380 = vmatprep.subr.mxu0 0.0
    %1381 = vmatpush1.msra.mxu0 0.0
    %1382 = vmatprep.subr.mxu0 0.0
    %1383 = vmatpush1.msra.mxu0 0.0
    %1384 = vmatprep.subr.mxu0 %v411
    %1385 = vmatpush1.msra.mxu0 %v410
    %1386 = vmatprep.subr.mxu0 %v407
    %1387 = vmatpush1.msra.mxu0 %v406
    %1388 = vmatprep.subr.mxu0 0.0
    %1389 = vmatpush2.msra.mxu0 0.0
    %1390 = vmatprep.subr.mxu0 0.0
    %1391 = vmatpush2.msra.mxu0 0.0
    %1392 = vmatprep.subr.mxu0 0.0
    %1393 = vmatpush2.msra.mxu0 0.0
    %1394 = vmatprep.subr.mxu0 0.0
    %1395 = vmatpush2.msra.mxu0 0.0
    %1396 = vmatprep.subr.mxu0 0.0
    %1397 = vmatpush2.msra.mxu0 0.0
    %1398 = vmatprep.subr.mxu0 0.0
    %1399 = vmatpush2.msra.mxu0 0.0
    %1400 = vmatprep.subr.mxu0 0.0
    %1401 = vmatpush2.msra.mxu0 0.0
    %1402 = vmatprep.subr.mxu0 0.0
    %1403 = vmatpush2.msra.mxu0 0.0
    %1404 = vmatprep.subr.mxu0 0.0
    %1405 = vmatpush2.msra.mxu0 0.0
    %1406 = vmatprep.subr.mxu0 0.0
    %1407 = vmatpush2.msra.mxu0 0.0
    %1408 = vmatprep.subr.mxu0 0.0
    %1409 = vmatpush2.msra.mxu0 0.0
    %1410 = vmatprep.subr.mxu0 0.0
    %1411 = vmatpush2.msra.mxu0 0.0
    %1412 = vmatprep.subr.mxu0 0.0
    %1413 = vmatpush2.msra.mxu0 0.0
    %1414 = vmatprep.subr.mxu0 0.0
    %1415 = vmatpush2.msra.mxu0 0.0
    %1416 = vmatprep.subr.mxu0 0.0
    %1417 = vmatpush2.msra.mxu0 0.0
    %1418 = vmatprep.subr.mxu0 0.0
    %1419 = vmatpush2.msra.mxu0 0.0
    %1420 = vmatprep.mubr.f32.mxu0 0.0
    %1421 = vmatmul.mubr.f32.gmra.mxu0 %v1283
    %v1422 = vpop.f32.mrf.mxu0
    %v1423 = vadd.f32 0.0, %v1422
    %v1424 = vpop.f32.mrf.mxu0
    %v1425 = vadd.f32 0.0, %v1424
    %1426 = vdwg.mxu0
    %v1427 = vadd.f32 %v1278, %v1352
    %v1428 = vadd.f32 %v1279, %v1354
    %v1429 = vadd.f32 %v1280, %v1423
    %v1430 = vadd.f32 %v1281, %v1425
    %v1431 = vmul.f32 %v1427, 0.5
    %v1432 = vtanh.pop %v1431
    %v1433 = vmul.f32 %v1432, 0.5
    %v1434 = vadd.f32 %v1433, 0.5
    %v1435 = vmul.f32 %v1428, 0.5
    %v1436 = vtanh.pop %v1435
    %v1437 = vmul.f32 %v1436, 0.5
    %v1438 = vadd.f32 %v1437, 0.5
    %v1439 = vtanh.pop %v1429
    %v1440 = vmul.f32 %v1430, 0.5
    %v1441 = vtanh.pop %v1440
    %v1442 = vmul.f32 %v1441, 0.5
    %v1443 = vadd.f32 %v1442, 0.5
    %v1444 = vmul.f32 %v1438, %v1272
    %v1445 = vmul.f32 %v1434, %v1439
    %v1446 = vadd.f32 %v1444, %v1445
    %v1447 = vtanh.pop %v1446
    %v1448 = vmul.f32 %v1443, %v1447
    %s1449 = smul.u32 6, 4
    %s1450 = smul.addr %s1449, 8
    %s1451 = scalar_lea.vmem [#allocation2], %s1450
    %v1452 = vld [vmem:[%s1451] sm:$0xff]
    %v1453 = vld [vmem:[%s1451 + $0x8] sm:$0xff]
    %v1454 = vld [vmem:[%s1451 + $0x10] sm:$0xff]
    %v1455 = vld [vmem:[%s1451 + $0x18] sm:$0xff]
    %v1457 = vsel %vm76, %v1448, 0
    %1459 = vmatprep.subr.mxu0 0.0
    %1460 = vmatpush1.msra.mxu0 0.0
    %1461 = vmatprep.subr.mxu0 0.0
    %1462 = vmatpush1.msra.mxu0 0.0
    %1463 = vmatprep.subr.mxu0 0.0
    %1464 = vmatpush1.msra.mxu0 0.0
    %1465 = vmatprep.subr.mxu0 0.0
    %1466 = vmatpush1.msra.mxu0 0.0
    %1467 = vmatprep.subr.mxu0 0.0
    %1468 = vmatpush1.msra.mxu0 0.0
    %1469 = vmatprep.subr.mxu0 0.0
    %1470 = vmatpush1.msra.mxu0 0.0
    %1471 = vmatprep.subr.mxu0 0.0
    %1472 = vmatpush1.msra.mxu0 0.0
    %1473 = vmatprep.subr.mxu0 0.0
    %1474 = vmatpush1.msra.mxu0 0.0
    %1475 = vmatprep.subr.mxu0 0.0
    %1476 = vmatpush1.msra.mxu0 0.0
    %1477 = vmatprep.subr.mxu0 0.0
    %1478 = vmatpush1.msra.mxu0 0.0
    %1479 = vmatprep.subr.mxu0 0.0
    %1480 = vmatpush1.msra.mxu0 0.0
    %1481 = vmatprep.subr.mxu0 0.0
    %1482 = vmatpush1.msra.mxu0 0.0
    %1483 = vmatprep.subr.mxu0 0.0
    %1484 = vmatpush1.msra.mxu0 0.0
    %1485 = vmatprep.subr.mxu0 0.0
    %1486 = vmatpush1.msra.mxu0 0.0
    %1487 = vmatprep.subr.mxu0 %v409
    %1488 = vmatpush1.msra.mxu0 %v408
    %1489 = vmatprep.subr.mxu0 %v405
    %1490 = vmatpush1.msra.mxu0 %v404
    %1491 = vmatprep.subr.mxu0 0.0
    %1492 = vmatpush2.msra.mxu0 0.0
    %1493 = vmatprep.subr.mxu0 0.0
    %1494 = vmatpush2.msra.mxu0 0.0
    %1495 = vmatprep.subr.mxu0 0.0
    %1496 = vmatpush2.msra.mxu0 0.0
    %1497 = vmatprep.subr.mxu0 0.0
    %1498 = vmatpush2.msra.mxu0 0.0
    %1499 = vmatprep.subr.mxu0 0.0
    %1500 = vmatpush2.msra.mxu0 0.0
    %1501 = vmatprep.subr.mxu0 0.0
    %1502 = vmatpush2.msra.mxu0 0.0
    %1503 = vmatprep.subr.mxu0 0.0
    %1504 = vmatpush2.msra.mxu0 0.0
    %1505 = vmatprep.subr.mxu0 0.0
    %1506 = vmatpush2.msra.mxu0 0.0
    %1507 = vmatprep.subr.mxu0 0.0
    %1508 = vmatpush2.msra.mxu0 0.0
    %1509 = vmatprep.subr.mxu0 0.0
    %1510 = vmatpush2.msra.mxu0 0.0
    %1511 = vmatprep.subr.mxu0 0.0
    %1512 = vmatpush2.msra.mxu0 0.0
    %1513 = vmatprep.subr.mxu0 0.0
    %1514 = vmatpush2.msra.mxu0 0.0
    %1515 = vmatprep.subr.mxu0 0.0
    %1516 = vmatpush2.msra.mxu0 0.0
    %1517 = vmatprep.subr.mxu0 0.0
    %1518 = vmatpush2.msra.mxu0 0.0
    %1519 = vmatprep.subr.mxu0 0.0
    %1520 = vmatpush2.msra.mxu0 0.0
    %1521 = vmatprep.subr.mxu0 0.0
    %1522 = vmatpush2.msra.mxu0 0.0
    %1523 = vmatprep.mubr.f32.mxu0 0.0
    %1524 = vmatmul.mubr.f32.gmra.mxu0 %v1457
    %v1525 = vpop.f32.mrf.mxu0
    %v1526 = vadd.f32 0.0, %v1525
    %v1527 = vpop.f32.mrf.mxu0
    %v1528 = vadd.f32 0.0, %v1527
    %1529 = vdwg.mxu0
    %1530 = vmatprep.subr.mxu0 0.0
    %1531 = vmatpush1.msra.mxu0 0.0
    %1532 = vmatprep.subr.mxu0 0.0
    %1533 = vmatpush1.msra.mxu0 0.0
    %1534 = vmatprep.subr.mxu0 0.0
    %1535 = vmatpush1.msra.mxu0 0.0
    %1536 = vmatprep.subr.mxu0 0.0
    %1537 = vmatpush1.msra.mxu0 0.0
    %1538 = vmatprep.subr.mxu0 0.0
    %1539 = vmatpush1.msra.mxu0 0.0
    %1540 = vmatprep.subr.mxu0 0.0
    %1541 = vmatpush1.msra.mxu0 0.0
    %1542 = vmatprep.subr.mxu0 0.0
    %1543 = vmatpush1.msra.mxu0 0.0
    %1544 = vmatprep.subr.mxu0 0.0
    %1545 = vmatpush1.msra.mxu0 0.0
    %1546 = vmatprep.subr.mxu0 0.0
    %1547 = vmatpush1.msra.mxu0 0.0
    %1548 = vmatprep.subr.mxu0 0.0
    %1549 = vmatpush1.msra.mxu0 0.0
    %1550 = vmatprep.subr.mxu0 0.0
    %1551 = vmatpush1.msra.mxu0 0.0
    %1552 = vmatprep.subr.mxu0 0.0
    %1553 = vmatpush1.msra.mxu0 0.0
    %1554 = vmatprep.subr.mxu0 0.0
    %1555 = vmatpush1.msra.mxu0 0.0
    %1556 = vmatprep.subr.mxu0 0.0
    %1557 = vmatpush1.msra.mxu0 0.0
    %1558 = vmatprep.subr.mxu0 %v411
    %1559 = vmatpush1.msra.mxu0 %v410
    %1560 = vmatprep.subr.mxu0 %v407
    %1561 = vmatpush1.msra.mxu0 %v406
    %1562 = vmatprep.subr.mxu0 0.0
    %1563 = vmatpush2.msra.mxu0 0.0
    %1564 = vmatprep.subr.mxu0 0.0
    %1565 = vmatpush2.msra.mxu0 0.0
    %1566 = vmatprep.subr.mxu0 0.0
    %1567 = vmatpush2.msra.mxu0 0.0
    %1568 = vmatprep.subr.mxu0 0.0
    %1569 = vmatpush2.msra.mxu0 0.0
    %1570 = vmatprep.subr.mxu0 0.0
    %1571 = vmatpush2.msra.mxu0 0.0
    %1572 = vmatprep.subr.mxu0 0.0
    %1573 = vmatpush2.msra.mxu0 0.0
    %1574 = vmatprep.subr.mxu0 0.0
    %1575 = vmatpush2.msra.mxu0 0.0
    %1576 = vmatprep.subr.mxu0 0.0
    %1577 = vmatpush2.msra.mxu0 0.0
    %1578 = vmatprep.subr.mxu0 0.0
    %1579 = vmatpush2.msra.mxu0 0.0
    %1580 = vmatprep.subr.mxu0 0.0
    %1581 = vmatpush2.msra.mxu0 0.0
    %1582 = vmatprep.subr.mxu0 0.0
    %1583 = vmatpush2.msra.mxu0 0.0
    %1584 = vmatprep.subr.mxu0 0.0
    %1585 = vmatpush2.msra.mxu0 0.0
    %1586 = vmatprep.subr.mxu0 0.0
    %1587 = vmatpush2.msra.mxu0 0.0
    %1588 = vmatprep.subr.mxu0 0.0
    %1589 = vmatpush2.msra.mxu0 0.0
    %1590 = vmatprep.subr.mxu0 0.0
    %1591 = vmatpush2.msra.mxu0 0.0
    %1592 = vmatprep.subr.mxu0 0.0
    %1593 = vmatpush2.msra.mxu0 0.0
    %1594 = vmatprep.mubr.f32.mxu0 0.0
    %1595 = vmatmul.mubr.f32.gmra.mxu0 %v1457
    %v1596 = vpop.f32.mrf.mxu0
    %v1597 = vadd.f32 0.0, %v1596
    %v1598 = vpop.f32.mrf.mxu0
    %v1599 = vadd.f32 0.0, %v1598
    %1600 = vdwg.mxu0
    %v1601 = vadd.f32 %v1452, %v1526
    %v1602 = vadd.f32 %v1453, %v1528
    %v1603 = vadd.f32 %v1454, %v1597
    %v1604 = vadd.f32 %v1455, %v1599
    %v1605 = vmul.f32 %v1601, 0.5
    %v1606 = vtanh.pop %v1605
    %v1607 = vmul.f32 %v1606, 0.5
    %v1608 = vadd.f32 %v1607, 0.5
    %v1609 = vmul.f32 %v1602, 0.5
    %v1610 = vtanh.pop %v1609
    %v1611 = vmul.f32 %v1610, 0.5
    %v1612 = vadd.f32 %v1611, 0.5
    %v1613 = vtanh.pop %v1603
    %v1614 = vmul.f32 %v1604, 0.5
    %v1615 = vtanh.pop %v1614
    %v1616 = vmul.f32 %v1615, 0.5
    %v1617 = vadd.f32 %v1616, 0.5
    %v1618 = vmul.f32 %v1612, %v1446
    %v1619 = vmul.f32 %v1608, %v1613
    %v1620 = vadd.f32 %v1618, %v1619
    %v1621 = vtanh.pop %v1620
    %v1622 = vmul.f32 %v1617, %v1621
    %s1623 = smul.u32 7, 4
    %s1624 = smul.addr %s1623, 8
    %s1625 = scalar_lea.vmem [#allocation2], %s1624
    %v1626 = vld [vmem:[%s1625] sm:$0xff]
    %v1627 = vld [vmem:[%s1625 + $0x8] sm:$0xff]
    %v1628 = vld [vmem:[%s1625 + $0x10] sm:$0xff]
    %v1629 = vld [vmem:[%s1625 + $0x18] sm:$0xff]
    %v1631 = vsel %vm76, %v1622, 0
    %1633 = vmatprep.subr.mxu0 0.0
    %1634 = vmatpush1.msra.mxu0 0.0
    %1635 = vmatprep.subr.mxu0 0.0
    %1636 = vmatpush1.msra.mxu0 0.0
    %1637 = vmatprep.subr.mxu0 0.0
    %1638 = vmatpush1.msra.mxu0 0.0
    %1639 = vmatprep.subr.mxu0 0.0
    %1640 = vmatpush1.msra.mxu0 0.0
    %1641 = vmatprep.subr.mxu0 0.0
    %1642 = vmatpush1.msra.mxu0 0.0
    %1643 = vmatprep.subr.mxu0 0.0
    %1644 = vmatpush1.msra.mxu0 0.0
    %1645 = vmatprep.subr.mxu0 0.0
    %1646 = vmatpush1.msra.mxu0 0.0
    %1647 = vmatprep.subr.mxu0 0.0
    %1648 = vmatpush1.msra.mxu0 0.0
    %1649 = vmatprep.subr.mxu0 0.0
    %1650 = vmatpush1.msra.mxu0 0.0
    %1651 = vmatprep.subr.mxu0 0.0
    %1652 = vmatpush1.msra.mxu0 0.0
    %1653 = vmatprep.subr.mxu0 0.0
    %1654 = vmatpush1.msra.mxu0 0.0
    %1655 = vmatprep.subr.mxu0 0.0
    %1656 = vmatpush1.msra.mxu0 0.0
    %1657 = vmatprep.subr.mxu0 0.0
    %1658 = vmatpush1.msra.mxu0 0.0
    %1659 = vmatprep.subr.mxu0 0.0
    %1660 = vmatpush1.msra.mxu0 0.0
    %1661 = vmatprep.subr.mxu0 %v409
    %1662 = vmatpush1.msra.mxu0 %v408
    %1663 = vmatprep.subr.mxu0 %v405
    %1664 = vmatpush1.msra.mxu0 %v404
    %1665 = vmatprep.subr.mxu0 0.0
    %1666 = vmatpush2.msra.mxu0 0.0
    %1667 = vmatprep.subr.mxu0 0.0
    %1668 = vmatpush2.msra.mxu0 0.0
    %1669 = vmatprep.subr.mxu0 0.0
    %1670 = vmatpush2.msra.mxu0 0.0
    %1671 = vmatprep.subr.mxu0 0.0
    %1672 = vmatpush2.msra.mxu0 0.0
    %1673 = vmatprep.subr.mxu0 0.0
    %1674 = vmatpush2.msra.mxu0 0.0
    %1675 = vmatprep.subr.mxu0 0.0
    %1676 = vmatpush2.msra.mxu0 0.0
    %1677 = vmatprep.subr.mxu0 0.0
    %1678 = vmatpush2.msra.mxu0 0.0
    %1679 = vmatprep.subr.mxu0 0.0
    %1680 = vmatpush2.msra.mxu0 0.0
    %1681 = vmatprep.subr.mxu0 0.0
    %1682 = vmatpush2.msra.mxu0 0.0
    %1683 = vmatprep.subr.mxu0 0.0
    %1684 = vmatpush2.msra.mxu0 0.0
    %1685 = vmatprep.subr.mxu0 0.0
    %1686 = vmatpush2.msra.mxu0 0.0
    %1687 = vmatprep.subr.mxu0 0.0
    %1688 = vmatpush2.msra.mxu0 0.0
    %1689 = vmatprep.subr.mxu0 0.0
    %1690 = vmatpush2.msra.mxu0 0.0
    %1691 = vmatprep.subr.mxu0 0.0
    %1692 = vmatpush2.msra.mxu0 0.0
    %1693 = vmatprep.subr.mxu0 0.0
    %1694 = vmatpush2.msra.mxu0 0.0
    %1695 = vmatprep.subr.mxu0 0.0
    %1696 = vmatpush2.msra.mxu0 0.0
    %1697 = vmatprep.mubr.f32.mxu0 0.0
    %1698 = vmatmul.mubr.f32.gmra.mxu0 %v1631
    %v1699 = vpop.f32.mrf.mxu0
    %v1700 = vadd.f32 0.0, %v1699
    %v1701 = vpop.f32.mrf.mxu0
    %v1702 = vadd.f32 0.0, %v1701
    %1703 = vdwg.mxu0
    %1704 = vmatprep.subr.mxu0 0.0
    %1705 = vmatpush1.msra.mxu0 0.0
    %1706 = vmatprep.subr.mxu0 0.0
    %1707 = vmatpush1.msra.mxu0 0.0
    %1708 = vmatprep.subr.mxu0 0.0
    %1709 = vmatpush1.msra.mxu0 0.0
    %1710 = vmatprep.subr.mxu0 0.0
    %1711 = vmatpush1.msra.mxu0 0.0
    %1712 = vmatprep.subr.mxu0 0.0
    %1713 = vmatpush1.msra.mxu0 0.0
    %1714 = vmatprep.subr.mxu0 0.0
    %1715 = vmatpush1.msra.mxu0 0.0
    %1716 = vmatprep.subr.mxu0 0.0
    %1717 = vmatpush1.msra.mxu0 0.0
    %1718 = vmatprep.subr.mxu0 0.0
    %1719 = vmatpush1.msra.mxu0 0.0
    %1720 = vmatprep.subr.mxu0 0.0
    %1721 = vmatpush1.msra.mxu0 0.0
    %1722 = vmatprep.subr.mxu0 0.0
    %1723 = vmatpush1.msra.mxu0 0.0
    %1724 = vmatprep.subr.mxu0 0.0
    %1725 = vmatpush1.msra.mxu0 0.0
    %1726 = vmatprep.subr.mxu0 0.0
    %1727 = vmatpush1.msra.mxu0 0.0
    %1728 = vmatprep.subr.mxu0 0.0
    %1729 = vmatpush1.msra.mxu0 0.0
    %1730 = vmatprep.subr.mxu0 0.0
    %1731 = vmatpush1.msra.mxu0 0.0
    %1732 = vmatprep.subr.mxu0 %v411
    %1733 = vmatpush1.msra.mxu0 %v410
    %1734 = vmatprep.subr.mxu0 %v407
    %1735 = vmatpush1.msra.mxu0 %v406
    %1736 = vmatprep.subr.mxu0 0.0
    %1737 = vmatpush2.msra.mxu0 0.0
    %1738 = vmatprep.subr.mxu0 0.0
    %1739 = vmatpush2.msra.mxu0 0.0
    %1740 = vmatprep.subr.mxu0 0.0
    %1741 = vmatpush2.msra.mxu0 0.0
    %1742 = vmatprep.subr.mxu0 0.0
    %1743 = vmatpush2.msra.mxu0 0.0
    %1744 = vmatprep.subr.mxu0 0.0
    %1745 = vmatpush2.msra.mxu0 0.0
    %1746 = vmatprep.subr.mxu0 0.0
    %1747 = vmatpush2.msra.mxu0 0.0
    %1748 = vmatprep.subr.mxu0 0.0
    %1749 = vmatpush2.msra.mxu0 0.0
    %1750 = vmatprep.subr.mxu0 0.0
    %1751 = vmatpush2.msra.mxu0 0.0
    %1752 = vmatprep.subr.mxu0 0.0
    %1753 = vmatpush2.msra.mxu0 0.0
    %1754 = vmatprep.subr.mxu0 0.0
    %1755 = vmatpush2.msra.mxu0 0.0
    %1756 = vmatprep.subr.mxu0 0.0
    %1757 = vmatpush2.msra.mxu0 0.0
    %1758 = vmatprep.subr.mxu0 0.0
    %1759 = vmatpush2.msra.mxu0 0.0
    %1760 = vmatprep.subr.mxu0 0.0
    %1761 = vmatpush2.msra.mxu0 0.0
    %1762 = vmatprep.subr.mxu0 0.0
    %1763 = vmatpush2.msra.mxu0 0.0
    %1764 = vmatprep.subr.mxu0 0.0
    %1765 = vmatpush2.msra.mxu0 0.0
    %1766 = vmatprep.subr.mxu0 0.0
    %1767 = vmatpush2.msra.mxu0 0.0
    %1768 = vmatprep.mubr.f32.mxu0 0.0
    %1769 = vmatmul.mubr.f32.gmra.mxu0 %v1631
    %v1770 = vpop.f32.mrf.mxu0
    %v1771 = vadd.f32 0.0, %v1770
    %v1772 = vpop.f32.mrf.mxu0
    %v1773 = vadd.f32 0.0, %v1772
    %1774 = vdwg.mxu0
    %v1775 = vadd.f32 %v1626, %v1700
    %v1776 = vadd.f32 %v1627, %v1702
    %v1777 = vadd.f32 %v1628, %v1771
    %v1778 = vadd.f32 %v1629, %v1773
    %v1779 = vmul.f32 %v1775, 0.5
    %v1780 = vtanh.pop %v1779
    %v1781 = vmul.f32 %v1780, 0.5
    %v1782 = vadd.f32 %v1781, 0.5
    %v1783 = vmul.f32 %v1776, 0.5
    %v1784 = vtanh.pop %v1783
    %v1785 = vmul.f32 %v1784, 0.5
    %v1786 = vadd.f32 %v1785, 0.5
    %v1787 = vtanh.pop %v1777
    %v1788 = vmul.f32 %v1778, 0.5
    %v1789 = vtanh.pop %v1788
    %v1790 = vmul.f32 %v1789, 0.5
    %v1791 = vadd.f32 %v1790, 0.5
    %v1792 = vmul.f32 %v1786, %v1620
    %v1793 = vmul.f32 %v1782, %v1787
    %v1794 = vadd.f32 %v1792, %v1793
    %v1795 = vtanh.pop %v1794
    %v1796 = vmul.f32 %v1791, %v1795
    %s1797 = smul.u32 8, 4
    %s1798 = smul.addr %s1797, 8
    %s1799 = scalar_lea.vmem [#allocation2], %s1798
    %v1800 = vld [vmem:[%s1799] sm:$0xff]
    %v1801 = vld [vmem:[%s1799 + $0x8] sm:$0xff]
    %v1802 = vld [vmem:[%s1799 + $0x10] sm:$0xff]
    %v1803 = vld [vmem:[%s1799 + $0x18] sm:$0xff]
    %v1805 = vsel %vm76, %v1796, 0
    %1807 = vmatprep.subr.mxu0 0.0
    %1808 = vmatpush1.msra.mxu0 0.0
    %1809 = vmatprep.subr.mxu0 0.0
    %1810 = vmatpush1.msra.mxu0 0.0
    %1811 = vmatprep.subr.mxu0 0.0
    %1812 = vmatpush1.msra.mxu0 0.0
    %1813 = vmatprep.subr.mxu0 0.0
    %1814 = vmatpush1.msra.mxu0 0.0
    %1815 = vmatprep.subr.mxu0 0.0
    %1816 = vmatpush1.msra.mxu0 0.0
    %1817 = vmatprep.subr.mxu0 0.0
    %1818 = vmatpush1.msra.mxu0 0.0
    %1819 = vmatprep.subr.mxu0 0.0
    %1820 = vmatpush1.msra.mxu0 0.0
    %1821 = vmatprep.subr.mxu0 0.0
    %1822 = vmatpush1.msra.mxu0 0.0
    %1823 = vmatprep.subr.mxu0 0.0
    %1824 = vmatpush1.msra.mxu0 0.0
    %1825 = vmatprep.subr.mxu0 0.0
    %1826 = vmatpush1.msra.mxu0 0.0
    %1827 = vmatprep.subr.mxu0 0.0
    %1828 = vmatpush1.msra.mxu0 0.0
    %1829 = vmatprep.subr.mxu0 0.0
    %1830 = vmatpush1.msra.mxu0 0.0
    %1831 = vmatprep.subr.mxu0 0.0
    %1832 = vmatpush1.msra.mxu0 0.0
    %1833 = vmatprep.subr.mxu0 0.0
    %1834 = vmatpush1.msra.mxu0 0.0
    %1835 = vmatprep.subr.mxu0 %v409
    %1836 = vmatpush1.msra.mxu0 %v408
    %1837 = vmatprep.subr.mxu0 %v405
    %1838 = vmatpush1.msra.mxu0 %v404
    %1839 = vmatprep.subr.mxu0 0.0
    %1840 = vmatpush2.msra.mxu0 0.0
    %1841 = vmatprep.subr.mxu0 0.0
    %1842 = vmatpush2.msra.mxu0 0.0
    %1843 = vmatprep.subr.mxu0 0.0
    %1844 = vmatpush2.msra.mxu0 0.0
    %1845 = vmatprep.subr.mxu0 0.0
    %1846 = vmatpush2.msra.mxu0 0.0
    %1847 = vmatprep.subr.mxu0 0.0
    %1848 = vmatpush2.msra.mxu0 0.0
    %1849 = vmatprep.subr.mxu0 0.0
    %1850 = vmatpush2.msra.mxu0 0.0
    %1851 = vmatprep.subr.mxu0 0.0
    %1852 = vmatpush2.msra.mxu0 0.0
    %1853 = vmatprep.subr.mxu0 0.0
    %1854 = vmatpush2.msra.mxu0 0.0
    %1855 = vmatprep.subr.mxu0 0.0
    %1856 = vmatpush2.msra.mxu0 0.0
    %1857 = vmatprep.subr.mxu0 0.0
    %1858 = vmatpush2.msra.mxu0 0.0
    %1859 = vmatprep.subr.mxu0 0.0
    %1860 = vmatpush2.msra.mxu0 0.0
    %1861 = vmatprep.subr.mxu0 0.0
    %1862 = vmatpush2.msra.mxu0 0.0
    %1863 = vmatprep.subr.mxu0 0.0
    %1864 = vmatpush2.msra.mxu0 0.0
    %1865 = vmatprep.subr.mxu0 0.0
    %1866 = vmatpush2.msra.mxu0 0.0
    %1867 = vmatprep.subr.mxu0 0.0
    %1868 = vmatpush2.msra.mxu0 0.0
    %1869 = vmatprep.subr.mxu0 0.0
    %1870 = vmatpush2.msra.mxu0 0.0
    %1871 = vmatprep.mubr.f32.mxu0 0.0
    %1872 = vmatmul.mubr.f32.gmra.mxu0 %v1805
    %v1873 = vpop.f32.mrf.mxu0
    %v1874 = vadd.f32 0.0, %v1873
    %v1875 = vpop.f32.mrf.mxu0
    %v1876 = vadd.f32 0.0, %v1875
    %1877 = vdwg.mxu0
    %1878 = vmatprep.subr.mxu0 0.0
    %1879 = vmatpush1.msra.mxu0 0.0
    %1880 = vmatprep.subr.mxu0 0.0
    %1881 = vmatpush1.msra.mxu0 0.0
    %1882 = vmatprep.subr.mxu0 0.0
    %1883 = vmatpush1.msra.mxu0 0.0
    %1884 = vmatprep.subr.mxu0 0.0
    %1885 = vmatpush1.msra.mxu0 0.0
    %1886 = vmatprep.subr.mxu0 0.0
    %1887 = vmatpush1.msra.mxu0 0.0
    %1888 = vmatprep.subr.mxu0 0.0
    %1889 = vmatpush1.msra.mxu0 0.0
    %1890 = vmatprep.subr.mxu0 0.0
    %1891 = vmatpush1.msra.mxu0 0.0
    %1892 = vmatprep.subr.mxu0 0.0
    %1893 = vmatpush1.msra.mxu0 0.0
    %1894 = vmatprep.subr.mxu0 0.0
    %1895 = vmatpush1.msra.mxu0 0.0
    %1896 = vmatprep.subr.mxu0 0.0
    %1897 = vmatpush1.msra.mxu0 0.0
    %1898 = vmatprep.subr.mxu0 0.0
    %1899 = vmatpush1.msra.mxu0 0.0
    %1900 = vmatprep.subr.mxu0 0.0
    %1901 = vmatpush1.msra.mxu0 0.0
    %1902 = vmatprep.subr.mxu0 0.0
    %1903 = vmatpush1.msra.mxu0 0.0
    %1904 = vmatprep.subr.mxu0 0.0
    %1905 = vmatpush1.msra.mxu0 0.0
    %1906 = vmatprep.subr.mxu0 %v411
    %1907 = vmatpush1.msra.mxu0 %v410
    %1908 = vmatprep.subr.mxu0 %v407
    %1909 = vmatpush1.msra.mxu0 %v406
    %1910 = vmatprep.subr.mxu0 0.0
    %1911 = vmatpush2.msra.mxu0 0.0
    %1912 = vmatprep.subr.mxu0 0.0
    %1913 = vmatpush2.msra.mxu0 0.0
    %1914 = vmatprep.subr.mxu0 0.0
    %1915 = vmatpush2.msra.mxu0 0.0
    %1916 = vmatprep.subr.mxu0 0.0
    %1917 = vmatpush2.msra.mxu0 0.0
    %1918 = vmatprep.subr.mxu0 0.0
    %1919 = vmatpush2.msra.mxu0 0.0
    %1920 = vmatprep.subr.mxu0 0.0
    %1921 = vmatpush2.msra.mxu0 0.0
    %1922 = vmatprep.subr.mxu0 0.0
    %1923 = vmatpush2.msra.mxu0 0.0
    %1924 = vmatprep.subr.mxu0 0.0
    %1925 = vmatpush2.msra.mxu0 0.0
    %1926 = vmatprep.subr.mxu0 0.0
    %1927 = vmatpush2.msra.mxu0 0.0
    %1928 = vmatprep.subr.mxu0 0.0
    %1929 = vmatpush2.msra.mxu0 0.0
    %1930 = vmatprep.subr.mxu0 0.0
    %1931 = vmatpush2.msra.mxu0 0.0
    %1932 = vmatprep.subr.mxu0 0.0
    %1933 = vmatpush2.msra.mxu0 0.0
    %1934 = vmatprep.subr.mxu0 0.0
    %1935 = vmatpush2.msra.mxu0 0.0
    %1936 = vmatprep.subr.mxu0 0.0
    %1937 = vmatpush2.msra.mxu0 0.0
    %1938 = vmatprep.subr.mxu0 0.0
    %1939 = vmatpush2.msra.mxu0 0.0
    %1940 = vmatprep.subr.mxu0 0.0
    %1941 = vmatpush2.msra.mxu0 0.0
    %1942 = vmatprep.mubr.f32.mxu0 0.0
    %1943 = vmatmul.mubr.f32.gmra.mxu0 %v1805
    %v1944 = vpop.f32.mrf.mxu0
    %v1945 = vadd.f32 0.0, %v1944
    %v1946 = vpop.f32.mrf.mxu0
    %v1947 = vadd.f32 0.0, %v1946
    %1948 = vdwg.mxu0
    %v1949 = vadd.f32 %v1800, %v1874
    %v1950 = vadd.f32 %v1801, %v1876
    %v1951 = vadd.f32 %v1802, %v1945
    %v1952 = vadd.f32 %v1803, %v1947
    %v1953 = vmul.f32 %v1949, 0.5
    %v1954 = vtanh.pop %v1953
    %v1955 = vmul.f32 %v1954, 0.5
    %v1956 = vadd.f32 %v1955, 0.5
    %v1957 = vmul.f32 %v1950, 0.5
    %v1958 = vtanh.pop %v1957
    %v1959 = vmul.f32 %v1958, 0.5
    %v1960 = vadd.f32 %v1959, 0.5
    %v1961 = vtanh.pop %v1951
    %v1962 = vmul.f32 %v1952, 0.5
    %v1963 = vtanh.pop %v1962
    %v1964 = vmul.f32 %v1963, 0.5
    %v1965 = vadd.f32 %v1964, 0.5
    %v1966 = vmul.f32 %v1960, %v1794
    %v1967 = vmul.f32 %v1956, %v1961
    %v1968 = vadd.f32 %v1966, %v1967
    %v1969 = vtanh.pop %v1968
    %v1970 = vmul.f32 %v1965, %v1969
    %s1971 = smul.u32 9, 4
    %s1972 = smul.addr %s1971, 8
    %s1973 = scalar_lea.vmem [#allocation2], %s1972
    %v1974 = vld [vmem:[%s1973] sm:$0xff]
    %v1975 = vld [vmem:[%s1973 + $0x8] sm:$0xff]
    %v1976 = vld [vmem:[%s1973 + $0x10] sm:$0xff]
    %v1977 = vld [vmem:[%s1973 + $0x18] sm:$0xff]
    %v1979 = vsel %vm76, %v1970, 0
    %1981 = vmatprep.subr.mxu0 0.0
    %1982 = vmatpush1.msra.mxu0 0.0
    %1983 = vmatprep.subr.mxu0 0.0
    %1984 = vmatpush1.msra.mxu0 0.0
    %1985 = vmatprep.subr.mxu0 0.0
    %1986 = vmatpush1.msra.mxu0 0.0
    %1987 = vmatprep.subr.mxu0 0.0
    %1988 = vmatpush1.msra.mxu0 0.0
    %1989 = vmatprep.subr.mxu0 0.0
    %1990 = vmatpush1.msra.mxu0 0.0
    %1991 = vmatprep.subr.mxu0 0.0
    %1992 = vmatpush1.msra.mxu0 0.0
    %1993 = vmatprep.subr.mxu0 0.0
    %1994 = vmatpush1.msra.mxu0 0.0
    %1995 = vmatprep.subr.mxu0 0.0
    %1996 = vmatpush1.msra.mxu0 0.0
    %1997 = vmatprep.subr.mxu0 0.0
    %1998 = vmatpush1.msra.mxu0 0.0
    %1999 = vmatprep.subr.mxu0 0.0
    %2000 = vmatpush1.msra.mxu0 0.0
    %2001 = vmatprep.subr.mxu0 0.0
    %2002 = vmatpush1.msra.mxu0 0.0
    %2003 = vmatprep.subr.mxu0 0.0
    %2004 = vmatpush1.msra.mxu0 0.0
    %2005 = vmatprep.subr.mxu0 0.0
    %2006 = vmatpush1.msra.mxu0 0.0
    %2007 = vmatprep.subr.mxu0 0.0
    %2008 = vmatpush1.msra.mxu0 0.0
    %2009 = vmatprep.subr.mxu0 %v409
    %2010 = vmatpush1.msra.mxu0 %v408
    %2011 = vmatprep.subr.mxu0 %v405
    %2012 = vmatpush1.msra.mxu0 %v404
    %2013 = vmatprep.subr.mxu0 0.0
    %2014 = vmatpush2.msra.mxu0 0.0
    %2015 = vmatprep.subr.mxu0 0.0
    %2016 = vmatpush2.msra.mxu0 0.0
    %2017 = vmatprep.subr.mxu0 0.0
    %2018 = vmatpush2.msra.mxu0 0.0
    %2019 = vmatprep.subr.mxu0 0.0
    %2020 = vmatpush2.msra.mxu0 0.0
    %2021 = vmatprep.subr.mxu0 0.0
    %2022 = vmatpush2.msra.mxu0 0.0
    %2023 = vmatprep.subr.mxu0 0.0
    %2024 = vmatpush2.msra.mxu0 0.0
    %2025 = vmatprep.subr.mxu0 0.0
    %2026 = vmatpush2.msra.mxu0 0.0
    %2027 = vmatprep.subr.mxu0 0.0
    %2028 = vmatpush2.msra.mxu0 0.0
    %2029 = vmatprep.subr.mxu0 0.0
    %2030 = vmatpush2.msra.mxu0 0.0
    %2031 = vmatprep.subr.mxu0 0.0
    %2032 = vmatpush2.msra.mxu0 0.0
    %2033 = vmatprep.subr.mxu0 0.0
    %2034 = vmatpush2.msra.mxu0 0.0
    %2035 = vmatprep.subr.mxu0 0.0
    %2036 = vmatpush2.msra.mxu0 0.0
    %2037 = vmatprep.subr.mxu0 0.0
    %2038 = vmatpush2.msra.mxu0 0.0
    %2039 = vmatprep.subr.mxu0 0.0
    %2040 = vmatpush2.msra.mxu0 0.0
    %2041 = vmatprep.subr.mxu0 0.0
    %2042 = vmatpush2.msra.mxu0 0.0
    %2043 = vmatprep.subr.mxu0 0.0
    %2044 = vmatpush2.msra.mxu0 0.0
    %2045 = vmatprep.mubr.f32.mxu0 0.0
    %2046 = vmatmul.mubr.f32.gmra.mxu0 %v1979
    %v2047 = vpop.f32.mrf.mxu0
    %v2048 = vadd.f32 0.0, %v2047
    %v2049 = vpop.f32.mrf.mxu0
    %v2050 = vadd.f32 0.0, %v2049
    %2051 = vdwg.mxu0
    %2052 = vmatprep.subr.mxu0 0.0
    %2053 = vmatpush1.msra.mxu0 0.0
    %2054 = vmatprep.subr.mxu0 0.0
    %2055 = vmatpush1.msra.mxu0 0.0
    %2056 = vmatprep.subr.mxu0 0.0
    %2057 = vmatpush1.msra.mxu0 0.0
    %2058 = vmatprep.subr.mxu0 0.0
    %2059 = vmatpush1.msra.mxu0 0.0
    %2060 = vmatprep.subr.mxu0 0.0
    %2061 = vmatpush1.msra.mxu0 0.0
    %2062 = vmatprep.subr.mxu0 0.0
    %2063 = vmatpush1.msra.mxu0 0.0
    %2064 = vmatprep.subr.mxu0 0.0
    %2065 = vmatpush1.msra.mxu0 0.0
    %2066 = vmatprep.subr.mxu0 0.0
    %2067 = vmatpush1.msra.mxu0 0.0
    %2068 = vmatprep.subr.mxu0 0.0
    %2069 = vmatpush1.msra.mxu0 0.0
    %2070 = vmatprep.subr.mxu0 0.0
    %2071 = vmatpush1.msra.mxu0 0.0
    %2072 = vmatprep.subr.mxu0 0.0
    %2073 = vmatpush1.msra.mxu0 0.0
    %2074 = vmatprep.subr.mxu0 0.0
    %2075 = vmatpush1.msra.mxu0 0.0
    %2076 = vmatprep.subr.mxu0 0.0
    %2077 = vmatpush1.msra.mxu0 0.0
    %2078 = vmatprep.subr.mxu0 0.0
    %2079 = vmatpush1.msra.mxu0 0.0
    %2080 = vmatprep.subr.mxu0 %v411
    %2081 = vmatpush1.msra.mxu0 %v410
    %2082 = vmatprep.subr.mxu0 %v407
    %2083 = vmatpush1.msra.mxu0 %v406
    %2084 = vmatprep.subr.mxu0 0.0
    %2085 = vmatpush2.msra.mxu0 0.0
    %2086 = vmatprep.subr.mxu0 0.0
    %2087 = vmatpush2.msra.mxu0 0.0
    %2088 = vmatprep.subr.mxu0 0.0
    %2089 = vmatpush2.msra.mxu0 0.0
    %2090 = vmatprep.subr.mxu0 0.0
    %2091 = vmatpush2.msra.mxu0 0.0
    %2092 = vmatprep.subr.mxu0 0.0
    %2093 = vmatpush2.msra.mxu0 0.0
    %2094 = vmatprep.subr.mxu0 0.0
    %2095 = vmatpush2.msra.mxu0 0.0
    %2096 = vmatprep.subr.mxu0 0.0
    %2097 = vmatpush2.msra.mxu0 0.0
    %2098 = vmatprep.subr.mxu0 0.0
    %2099 = vmatpush2.msra.mxu0 0.0
    %2100 = vmatprep.subr.mxu0 0.0
    %2101 = vmatpush2.msra.mxu0 0.0
    %2102 = vmatprep.subr.mxu0 0.0
    %2103 = vmatpush2.msra.mxu0 0.0
    %2104 = vmatprep.subr.mxu0 0.0
    %2105 = vmatpush2.msra.mxu0 0.0
    %2106 = vmatprep.subr.mxu0 0.0
    %2107 = vmatpush2.msra.mxu0 0.0
    %2108 = vmatprep.subr.mxu0 0.0
    %2109 = vmatpush2.msra.mxu0 0.0
    %2110 = vmatprep.subr.mxu0 0.0
    %2111 = vmatpush2.msra.mxu0 0.0
    %2112 = vmatprep.subr.mxu0 0.0
    %2113 = vmatpush2.msra.mxu0 0.0
    %2114 = vmatprep.subr.mxu0 0.0
    %2115 = vmatpush2.msra.mxu0 0.0
    %2116 = vmatprep.mubr.f32.mxu0 0.0
    %2117 = vmatmul.mubr.f32.gmra.mxu0 %v1979
    %v2118 = vpop.f32.mrf.mxu0
    %v2119 = vadd.f32 0.0, %v2118
    %v2120 = vpop.f32.mrf.mxu0
    %v2121 = vadd.f32 0.0, %v2120
    %2122 = vdwg.mxu0
    %v2123 = vadd.f32 %v1974, %v2048
    %v2124 = vadd.f32 %v1975, %v2050
    %v2125 = vadd.f32 %v1976, %v2119
    %v2126 = vadd.f32 %v1977, %v2121
    %v2127 = vmul.f32 %v2123, 0.5
    %v2128 = vtanh.pop %v2127
    %v2129 = vmul.f32 %v2128, 0.5
    %v2130 = vadd.f32 %v2129, 0.5
    %v2131 = vmul.f32 %v2124, 0.5
    %v2132 = vtanh.pop %v2131
    %v2133 = vmul.f32 %v2132, 0.5
    %v2134 = vadd.f32 %v2133, 0.5
    %v2135 = vtanh.pop %v2125
    %v2136 = vmul.f32 %v2126, 0.5
    %v2137 = vtanh.pop %v2136
    %v2138 = vmul.f32 %v2137, 0.5
    %v2139 = vadd.f32 %v2138, 0.5
    %v2140 = vmul.f32 %v2134, %v1968
    %v2141 = vmul.f32 %v2130, %v2135
    %v2142 = vadd.f32 %v2140, %v2141
    %v2143 = vtanh.pop %v2142
    %v2144 = vmul.f32 %v2139, %v2143
    %v2145 = vld [vmem:[%s4] sm:$0x1]
    %v2147 = vlaneseq
    %v2148 = vshrl.u32 %v2147, 7
    %v2149 = vsub.s32 0, %v2148
    %v2150 = vrot.slane %v2145, %v2149
    %v2152 = vmul.f32 %v2144, %v2150
    %2153 = vadd.xlane.f32.xlu0 %v2152
    %v2154 = vpop.xlane.xlu0 %2153
    %s2155 = sld [smem:[#allocation3]]
    %v2156 = vstv %s2155
    %v2157 = vadd.f32 %v2154, %v2156
    %2158 = vst [vmem:[%s6] sm:$0xff] %v2157
    // Predicated region
    $region30: #{lstm_model_forward.1} parent=1 // pred_check
      _
    $region31: #{lstm_model_forward.1} parent=1 // pred_check_branch
      %2160 = sbr.rel (0) target = $region33
    $region32: #{lstm_model_forward.1} parent=1 // pred_region
      _
    $region33: #{lstm_model_forward.1} parent=1 // pred_fallthru
      _
    // Predicated region
    $region34: #{lstm_model_forward.1} parent=1 // pred_check
      _
    $region35: #{lstm_model_forward.1} parent=1 // pred_check_branch
      %2162 = sbr.rel (0) target = $region37
    $region36: #{lstm_model_forward.1} parent=1 // pred_region
      _
    $region37: #{lstm_model_forward.1} parent=1 // pred_fallthru
      _
    %2163 = vsyncpa [#allocation5], 1

</llo_original>
